<compile_context>
chip_gen: v5e
topology: v5e:2x2
jax: 0.10.0
libtpu: 0.0.40
codegen_flags: <defaults>
</compile_context>

<pallas_src>
import jax
import jax.numpy as jnp
from jax.experimental import pallas as pl
from jax.experimental.pallas import tpu as pltpu


# ----------------------------------------------------------------------------
# Kernel 1: critic path, fully fused
#   values = tanh(x @ W1 + b1) @ score_w + score_b
# Grid = (M // tm, H // tk): K-tiled reduction with an f32 VMEM accumulator;
# bias + tanh + score head applied once on the final K step.
# ----------------------------------------------------------------------------
def _critic_value_kernel(x_ref, w1_ref, b1_ref, sw_ref, sb_ref, val_ref, acc_ref):
    # x_ref  : (tm, tk)  bf16      w1_ref : (tk, H) bf16
    # b1_ref : (1, H)    f32       sw_ref : (1, H)  f32 (score_w transposed)
    # sb_ref : (1, 1)    f32       val_ref: (tm, 1) f32
    # acc_ref: (tm, H)   f32 scratch
    k = pl.program_id(1)

    @pl.when(k == 0)
    def _init():
        acc_ref[...] = jnp.zeros_like(acc_ref)

    acc_ref[...] += jnp.dot(x_ref[...], w1_ref[...],
                            preferred_element_type=jnp.float32)

    @pl.when(k == pl.num_programs(1) - 1)
    def _finalize():
        h = jnp.tanh(acc_ref[...] + b1_ref[...])                    # (tm, H) f32
        # score head: (H, 1) contraction as VPU multiply + lane reduce
        v = jnp.sum(h * sw_ref[...], axis=-1, keepdims=True) + sb_ref[...]
        val_ref[...] = v.astype(val_ref.dtype)


def critic_values(x, w1, b1, score_w_t, score_b, *, tm=128, tk=128):
    """values[M,1] = tanh(x @ w1 + b1) @ score_w_t.T + score_b (fused)."""
    M, H = x.shape
    assert w1.shape == (H, H)
    assert M % tm == 0 and H % tk == 0

    flops = 2 * M * H * H + 3 * M * H
    bytes_accessed = (x.size * x.dtype.itemsize
                      + w1.size * w1.dtype.itemsize
                      + (b1.size + score_w_t.size + score_b.size + M) * 4)

    return pl.pallas_call(
        _critic_value_kernel,
        out_shape=jax.ShapeDtypeStruct((M, 1), jnp.float32),
        grid=(M // tm, H // tk),
        in_specs=[
            pl.BlockSpec((tm, tk), lambda i, k: (i, k)),   # x
            pl.BlockSpec((tk, H), lambda i, k: (k, 0)),    # w1
            pl.BlockSpec((1, H), lambda i, k: (0, 0)),     # b1
            pl.BlockSpec((1, H), lambda i, k: (0, 0)),     # score_w (row layout)
            pl.BlockSpec((1, 1), lambda i, k: (0, 0)),     # score_b
        ],
        out_specs=pl.BlockSpec((tm, 1), lambda i, k: (i, 0)),
        scratch_shapes=[pltpu.VMEM((tm, H), jnp.float32)],
        compiler_params=pltpu.CompilerParams(
            dimension_semantics=("parallel", "arbitrary"),
            vmem_limit_bytes=32 * 1024 * 1024,
        ),
        cost_estimate=pl.CostEstimate(
            flops=flops, transcendentals=M * H, bytes_accessed=bytes_accessed),
    )(x, w1, b1, score_w_t, score_b)


# ----------------------------------------------------------------------------
# Kernel 2: policy path, fully fused
#   logits = tanh(x @ W1 + b1) @ lm_head_w + lm_head_b
# Grid = (M // tm, V // tn).  The hidden tile is computed once per M tile (at
# j == 0) into a bf16 VMEM scratch and reused for every vocab tile, so the
# hidden activation never round-trips through HBM.  The vocab axis must be
# "arbitrary" (scratch dependence); the M axis is "parallel" (megacore).
# ----------------------------------------------------------------------------
def _policy_logits_kernel(x_ref, w1_ref, b1_ref, wlm_ref, blm_ref, out_ref, h_ref):
    # x_ref  : (tm, H)  bf16      w1_ref : (H, H)  bf16    b1_ref : (1, H)  f32
    # wlm_ref: (H, tn)  bf16      blm_ref: (1, tn) f32
    # out_ref: (tm, tn) bf16      h_ref  : (tm, H) bf16 scratch
    j = pl.program_id(1)

    @pl.when(j == 0)
    def _hidden():
        h = jnp.dot(x_ref[...], w1_ref[...], preferred_element_type=jnp.float32)
        h = jnp.tanh(h + b1_ref[...])
        h_ref[...] = h.astype(h_ref.dtype)

    acc = jnp.dot(h_ref[...], wlm_ref[...], preferred_element_type=jnp.float32)
    out_ref[...] = (acc + blm_ref[...]).astype(out_ref.dtype)


def policy_logits_fused(x, w1, b1, wlm, blm, *, tm=128, tn=128):
    """logits[M,V] = tanh(x @ w1 + b1) @ wlm + blm (fused, hidden VMEM-resident)."""
    M, H = x.shape
    H2, V = wlm.shape
    assert H == H2 and w1.shape == (H, H)
    assert M % tm == 0 and V % tn == 0

    flops = 2 * M * H * H + 2 * M * H * V
    bytes_accessed = (x.size * x.dtype.itemsize
                      + w1.size * w1.dtype.itemsize
                      + wlm.size * wlm.dtype.itemsize
                      + (b1.size + blm.size) * 4
                      + M * V * 2)

    return pl.pallas_call(
        _policy_logits_kernel,
        out_shape=jax.ShapeDtypeStruct((M, V), jnp.bfloat16),
        grid=(M // tm, V // tn),
        in_specs=[
            pl.BlockSpec((tm, H), lambda i, j: (i, 0)),    # x
            pl.BlockSpec((H, H), lambda i, j: (0, 0)),     # w1
            pl.BlockSpec((1, H), lambda i, j: (0, 0)),     # b1
            pl.BlockSpec((H, tn), lambda i, j: (0, j)),    # lm_head_w vocab tile
            pl.BlockSpec((1, tn), lambda i, j: (0, j)),    # lm_head_b vocab tile
        ],
        out_specs=pl.BlockSpec((tm, tn), lambda i, j: (i, j)),
        scratch_shapes=[pltpu.VMEM((tm, H), jnp.bfloat16)],
        compiler_params=pltpu.CompilerParams(
            dimension_semantics=("parallel", "arbitrary"),
            vmem_limit_bytes=32 * 1024 * 1024,
        ),
        cost_estimate=pl.CostEstimate(
            flops=flops, transcendentals=M * H, bytes_accessed=bytes_accessed),
    )(x, w1, b1, wlm, blm)


# ----------------------------------------------------------------------------
# Parameter construction (deterministic, synthetic). bf16 weights, f32 biases.
# ----------------------------------------------------------------------------
def init_params(key, vocab, hidden):
    ks = jax.random.split(key, 10)
    scale = 0.02
    f32, bf16 = jnp.float32, jnp.bfloat16

    def w(k, shape):
        return (scale * jax.random.normal(k, shape, f32)).astype(bf16)

    def b(k, shape):
        return 0.01 * jax.random.normal(k, shape, f32)

    return {
        # policy
        "policy_embed": w(ks[0], (vocab, hidden)),
        "policy_w1": w(ks[1], (hidden, hidden)),
        "policy_b1": b(ks[2], (1, hidden)),
        "lm_head_w": w(ks[3], (hidden, vocab)),
        "lm_head_b": b(ks[4], (1, vocab)),
        # critic backbone (value_model base model)
        "critic_embed": w(ks[5], (vocab, hidden)),
        "critic_w1": w(ks[6], (hidden, hidden)),
        "critic_b1": b(ks[7], (1, hidden)),
        # value_model.score : Linear(hidden, 1); stored as (1, hidden) row for
        # a lane-dense broadcast inside the fused critic kernel.
        "score_w": scale * jax.random.normal(ks[8], (1, hidden), f32),
        "score_b": b(ks[9], (1, 1)),
    }


# ----------------------------------------------------------------------------
# PolicyAndValueWrapper.forward equivalent
# ----------------------------------------------------------------------------
def policy_and_value_forward(params, input_ids):
    """Returns (policy_logits [B,S,V] bf16, value_logits [B,S,1] f32)."""
    B, S = input_ids.shape
    V = params["lm_head_w"].shape[1]
    ids = input_ids.reshape(-1)

    # TODO(synk): fuse the embedding gathers into the first matmul of each
    # branch via scalar-prefetch / manual-DMA row gather; XLA glue for now.
    x_c = jnp.take(params["critic_embed"], ids, axis=0)      # (B*S, H) bf16
    x_p = jnp.take(params["policy_embed"], ids, axis=0)      # (B*S, H) bf16

    values = critic_values(x_c, params["critic_w1"], params["critic_b1"],
                           params["score_w"], params["score_b"])      # (B*S, 1)
    logits = policy_logits_fused(x_p, params["policy_w1"], params["policy_b1"],
                                 params["lm_head_w"], params["lm_head_b"])  # (B*S, V)

    return logits.reshape(B, S, V), values.reshape(B, S, 1)


# ----------------------------------------------------------------------------
# Plain-JAX reference (mirrors the kernel's bf16-compute / f32-accumulate path)
# ----------------------------------------------------------------------------
def ref_forward(params, input_ids):
    B, S = input_ids.shape
    V = params["lm_head_w"].shape[1]
    ids = input_ids.reshape(-1)
    f32 = jnp.float32

    # critic
    x_c = params["critic_embed"][ids].astype(f32)
    h_c = jnp.tanh(x_c @ params["critic_w1"].astype(f32) + params["critic_b1"])
    vals = (jnp.sum(h_c * params["score_w"], axis=-1, keepdims=True)
            + params["score_b"]).reshape(B, S, 1)

    # policy (hidden is held in bf16 inside the kernel -> round-trip it here)
    x_p = params["policy_embed"][ids].astype(f32)
    h_p = jnp.tanh(x_p @ params["policy_w1"].astype(f32) + params["policy_b1"])
    h_p = h_p.astype(jnp.bfloat16).astype(f32)
    lg = h_p @ params["lm_head_w"].astype(f32) + params["lm_head_b"]
    return lg.reshape(B, S, V), vals


# ----------------------------------------------------------------------------
if __name__ == "__main__":
    # Small but tile-aligned shapes: M = B*S = 128 rows, H = 256, V = 512.
    B, S, H, V = 2, 64, 256, 512

    key = jax.random.PRNGKey(0)
    pkey, ikey = jax.random.split(key)
    params = init_params(pkey, V, H)
    input_ids = jax.random.randint(ikey, (B, S), 0, V, dtype=jnp.int32)

    fwd = jax.jit(policy_and_value_forward)
    policy_out, value_out = fwd(params, input_ids)
    jax.block_until_ready((policy_out, value_out))

    assert policy_out.shape == (B, S, V)
    assert value_out.shape == (B, S, 1)

    ref_logits, ref_values = ref_forward(params, input_ids)

    assert jnp.allclose(value_out.astype(jnp.float32), ref_values,
                        atol=1e-4, rtol=1e-2), "value head mismatch"
    assert jnp.allclose(policy_out.astype(jnp.float32), ref_logits,
                        atol=1e-3, rtol=5e-2), "policy logits mismatch"

    print("KERNEL_OK")
</pallas_src>

<mosaic_0001>
module attributes {stable_mosaic.version = 11 : i64} {
  func.func @_critic_value_kernel(%arg0: i32, %arg1: i32, %arg2: memref<128x128xbf16, #tpu.memory_space<vmem>>, %arg3: memref<128x256xbf16, #tpu.memory_space<vmem>>, %arg4: memref<1x256xf32, #tpu.memory_space<vmem>>, %arg5: memref<1x256xf32, #tpu.memory_space<vmem>>, %arg6: memref<1x1xf32, #tpu.memory_space<vmem>>, %arg7: memref<128x1xf32, #tpu.memory_space<vmem>>, %arg8: memref<128x256xf32, #tpu.memory_space<vmem>>) attributes {dimension_semantics = [#tpu.dimension_semantics<parallel>, #tpu.dimension_semantics<arbitrary>], iteration_bounds = array<i64: 1, 2>, scalar_prefetch = 0 : i64, scratch_operands = 1 : i64, tpu.core_type = #tpu.core_type<tc>, window_params = [{transform_indices = @transform_0, window_bounds = array<i64: 128, 128>}, {transform_indices = @transform_1, window_bounds = array<i64: 128, 256>}, {pipeline_mode = #tpu.pipeline_mode<synchronous>, transform_indices = @transform_2, window_bounds = array<i64: 1, 256>}, {pipeline_mode = #tpu.pipeline_mode<synchronous>, transform_indices = @transform_3, window_bounds = array<i64: 1, 256>}, {pipeline_mode = #tpu.pipeline_mode<synchronous>, transform_indices = @transform_4, window_bounds = array<i64: 1, 1>}, {transform_indices = @transform_5, window_bounds = array<i64: 128, 1>}]} {
    %c0_i32 = arith.constant 0 : i32
    %0 = arith.cmpi eq, %arg1, %c0_i32 : i32
    %1 = arith.extui %0 : i1 to i32
    %c0_i32_0 = arith.constant 0 : i32
    %2 = arith.cmpi ne, %1, %c0_i32_0 : i32
    scf.if %2 {
      %cst_9 = arith.constant 0.000000e+00 : f32
      %12 = vector.broadcast %cst_9 : f32 to vector<128x256xf32>
      %c0_10 = arith.constant 0 : index
      %c0_11 = arith.constant 0 : index
      %13 = vector.load %arg8[%c0_10, %c0_11] : memref<128x256xf32, #tpu.memory_space<vmem>>, vector<128x256xf32>
      tpu.vector_store %arg8[%c0_10, %c0_11], %12 {strides = array<i32>} : memref<128x256xf32, #tpu.memory_space<vmem>>, vector<128x256xf32>,
    } else {
    }
    %c0 = arith.constant 0 : index
    %c0_1 = arith.constant 0 : index
    %3 = vector.load %arg8[%c0, %c0_1] : memref<128x256xf32, #tpu.memory_space<vmem>>, vector<128x256xf32>
    %c0_2 = arith.constant 0 : index
    %c0_3 = arith.constant 0 : index
    %4 = vector.load %arg2[%c0_2, %c0_3] : memref<128x128xbf16, #tpu.memory_space<vmem>>, vector<128x128xbf16>
    %c0_4 = arith.constant 0 : index
    %c0_5 = arith.constant 0 : index
    %5 = vector.load %arg3[%c0_4, %c0_5] : memref<128x256xbf16, #tpu.memory_space<vmem>>, vector<128x256xbf16>
    %cst = arith.constant dense<0.000000e+00> : vector<128x256xf32>
    %6 = tpu.matmul %4, %5, %cst {dimension_numbers = #tpu.dot_dimension_numbers<[1], [0], [0], [1], [0, 0, 1, 1], [], []>} : vector<128x128xbf16>, vector<128x256xbf16>, vector<128x256xf32> -> vector<128x256xf32>
    %7 = arith.addf %3, %6 : vector<128x256xf32>
    %c0_6 = arith.constant 0 : index
    %c0_7 = arith.constant 0 : index
    %8 = vector.load %arg8[%c0_6, %c0_7] : memref<128x256xf32, #tpu.memory_space<vmem>>, vector<128x256xf32>
    tpu.vector_store %arg8[%c0_6, %c0_7], %7 {strides = array<i32>} : memref<128x256xf32, #tpu.memory_space<vmem>>, vector<128x256xf32>,
    %c1_i32 = arith.constant 1 : i32
    %9 = arith.cmpi eq, %arg1, %c1_i32 : i32
    %10 = arith.extui %9 : i1 to i32
    %c0_i32_8 = arith.constant 0 : i32
    %11 = arith.cmpi ne, %10, %c0_i32_8 : i32
    scf.if %11 {
      %c0_9 = arith.constant 0 : index
      %c0_10 = arith.constant 0 : index
      %12 = vector.load %arg8[%c0_9, %c0_10] : memref<128x256xf32, #tpu.memory_space<vmem>>, vector<128x256xf32>
      %c0_11 = arith.constant 0 : index
      %c0_12 = arith.constant 0 : index
      %13 = vector.load %arg4[%c0_11, %c0_12] : memref<1x256xf32, #tpu.memory_space<vmem>>, vector<1x256xf32>
      %14 = vector.broadcast %13 : vector<1x256xf32> to vector<128x256xf32>
      %15 = arith.addf %12, %14 : vector<128x256xf32>
      %16 = math.tanh %15 : vector<128x256xf32>
      %c0_13 = arith.constant 0 : index
      %c0_14 = arith.constant 0 : index
      %17 = vector.load %arg5[%c0_13, %c0_14] : memref<1x256xf32, #tpu.memory_space<vmem>>, vector<1x256xf32>
      %18 = vector.broadcast %17 : vector<1x256xf32> to vector<128x256xf32>
      %19 = arith.mulf %16, %18 : vector<128x256xf32>
      %cst_15 = arith.constant dense<0.000000e+00> : vector<128xf32>
      %20 = vector.multi_reduction <add>, %19, %cst_15 [1] : vector<128x256xf32> to vector<128xf32>
      %21 = vector.shape_cast %20 : vector<128xf32> to vector<128x1xf32>
      %c0_16 = arith.constant 0 : index
      %c0_17 = arith.constant 0 : index
      %22 = vector.load %arg6[%c0_16, %c0_17] : memref<1x1xf32, #tpu.memory_space<vmem>>, vector<1x1xf32>
      %23 = vector.broadcast %22 : vector<1x1xf32> to vector<128x1xf32>
      %24 = arith.addf %21, %23 : vector<128x1xf32>
      %c0_18 = arith.constant 0 : index
      %c0_19 = arith.constant 0 : index
      %25 = vector.load %arg7[%c0_18, %c0_19] : memref<128x1xf32, #tpu.memory_space<vmem>>, vector<128x1xf32>
      tpu.vector_store %arg7[%c0_18, %c0_19], %24 {strides = array<i32>} : memref<128x1xf32, #tpu.memory_space<vmem>>, vector<128x1xf32>,
    } else {
    }
    return
  }
  func.func @transform_0(%arg0: i32, %arg1: i32) -> (i32, i32) {
    %c0_i32 = arith.constant 0 : i32
    return %arg0, %arg1 : i32, i32
  }
  func.func @transform_1(%arg0: i32, %arg1: i32) -> (i32, i32) {
    %c0_i32 = arith.constant 0 : i32
    %c0_i32_0 = arith.constant 0 : i32
    return %arg1, %c0_i32 : i32, i32
  }
  func.func @transform_2(%arg0: i32, %arg1: i32) -> (i32, i32) {
    %c0_i32 = arith.constant 0 : i32
    %c0_i32_0 = arith.constant 0 : i32
    %c0_i32_1 = arith.constant 0 : i32
    return %c0_i32, %c0_i32_0 : i32, i32
  }
  func.func @transform_3(%arg0: i32, %arg1: i32) -> (i32, i32) {
    %c0_i32 = arith.constant 0 : i32
    %c0_i32_0 = arith.constant 0 : i32
    %c0_i32_1 = arith.constant 0 : i32
    return %c0_i32, %c0_i32_0 : i32, i32
  }
  func.func @transform_4(%arg0: i32, %arg1: i32) -> (i32, i32) {
    %c0_i32 = arith.constant 0 : i32
    %c0_i32_0 = arith.constant 0 : i32
    %c0_i32_1 = arith.constant 0 : i32
    return %c0_i32, %c0_i32_0 : i32, i32
  }
  func.func @transform_5(%arg0: i32, %arg1: i32) -> (i32, i32) {
    %c0_i32 = arith.constant 0 : i32
    %c0_i32_0 = arith.constant 0 : i32
    return %arg0, %c0_i32 : i32, i32
  }
}

module attributes {stable_mosaic.version = 11 : i64} {
  func.func @_policy_logits_kernel(%arg0: i32, %arg1: i32, %arg2: memref<128x256xbf16, #tpu.memory_space<vmem>>, %arg3: memref<256x256xbf16, #tpu.memory_space<vmem>>, %arg4: memref<1x256xf32, #tpu.memory_space<vmem>>, %arg5: memref<256x128xbf16, #tpu.memory_space<vmem>>, %arg6: memref<1x128xf32, #tpu.memory_space<vmem>>, %arg7: memref<128x128xbf16, #tpu.memory_space<vmem>>, %arg8: memref<128x256xbf16, #tpu.memory_space<vmem>>) attributes {dimension_semantics = [#tpu.dimension_semantics<parallel>, #tpu.dimension_semantics<arbitrary>], iteration_bounds = array<i64: 1, 4>, scalar_prefetch = 0 : i64, scratch_operands = 1 : i64, tpu.core_type = #tpu.core_type<tc>, window_params = [{transform_indices = @transform_0, window_bounds = array<i64: 128, 256>}, {pipeline_mode = #tpu.pipeline_mode<synchronous>, transform_indices = @transform_1, window_bounds = array<i64: 256, 256>}, {pipeline_mode = #tpu.pipeline_mode<synchronous>, transform_indices = @transform_2, window_bounds = array<i64: 1, 256>}, {transform_indices = @transform_3, window_bounds = array<i64: 256, 128>}, {transform_indices = @transform_4, window_bounds = array<i64: 1, 128>}, {transform_indices = @transform_5, window_bounds = array<i64: 128, 128>}]} {
    %c0_i32 = arith.constant 0 : i32
    %0 = arith.cmpi eq, %arg1, %c0_i32 : i32
    %1 = arith.extui %0 : i1 to i32
    %c0_i32_0 = arith.constant 0 : i32
    %2 = arith.cmpi ne, %1, %c0_i32_0 : i32
    scf.if %2 {
      %c0_8 = arith.constant 0 : index
      %c0_9 = arith.constant 0 : index
      %11 = vector.load %arg2[%c0_8, %c0_9] : memref<128x256xbf16, #tpu.memory_space<vmem>>, vector<128x256xbf16>
      %c0_10 = arith.constant 0 : index
      %c0_11 = arith.constant 0 : index
      %12 = vector.load %arg3[%c0_10, %c0_11] : memref<256x256xbf16, #tpu.memory_space<vmem>>, vector<256x256xbf16>
      %cst_12 = arith.constant dense<0.000000e+00> : vector<128x256xf32>
      %13 = tpu.matmul %11, %12, %cst_12 {dimension_numbers = #tpu.dot_dimension_numbers<[1], [0], [0], [1], [0, 0, 1, 1], [], []>} : vector<128x256xbf16>, vector<256x256xbf16>, vector<128x256xf32> -> vector<128x256xf32>
      %c0_13 = arith.constant 0 : index
      %c0_14 = arith.constant 0 : index
      %14 = vector.load %arg4[%c0_13, %c0_14] : memref<1x256xf32, #tpu.memory_space<vmem>>, vector<1x256xf32>
      %15 = vector.broadcast %14 : vector<1x256xf32> to vector<128x256xf32>
      %16 = arith.addf %13, %15 : vector<128x256xf32>
      %17 = math.tanh %16 : vector<128x256xf32>
      %18 = arith.truncf %17 : vector<128x256xf32> to vector<128x256xbf16>
      %c0_15 = arith.constant 0 : index
      %c0_16 = arith.constant 0 : index
      %19 = vector.load %arg8[%c0_15, %c0_16] : memref<128x256xbf16, #tpu.memory_space<vmem>>, vector<128x256xbf16>
      tpu.vector_store %arg8[%c0_15, %c0_16], %18 {strides = array<i32>} : memref<128x256xbf16, #tpu.memory_space<vmem>>, vector<128x256xbf16>,
    } else {
    }
    %c0 = arith.constant 0 : index
    %c0_1 = arith.constant 0 : index
    %3 = vector.load %arg8[%c0, %c0_1] : memref<128x256xbf16, #tpu.memory_space<vmem>>, vector<128x256xbf16>
    %c0_2 = arith.constant 0 : index
    %c0_3 = arith.constant 0 : index
    %4 = vector.load %arg5[%c0_2, %c0_3] : memref<256x128xbf16, #tpu.memory_space<vmem>>, vector<256x128xbf16>
    %cst = arith.constant dense<0.000000e+00> : vector<128x128xf32>
    %5 = tpu.matmul %3, %4, %cst {dimension_numbers = #tpu.dot_dimension_numbers<[1], [0], [0], [1], [0, 0, 1, 1], [], []>} : vector<128x256xbf16>, vector<256x128xbf16>, vector<128x128xf32> -> vector<128x128xf32>
    %c0_4 = arith.constant 0 : index
    %c0_5 = arith.constant 0 : index
    %6 = vector.load %arg6[%c0_4, %c0_5] : memref<1x128xf32, #tpu.memory_space<vmem>>, vector<1x128xf32>
    %7 = vector.broadcast %6 : vector<1x128xf32> to vector<128x128xf32>
    %8 = arith.addf %5, %7 : vector<128x128xf32>
    %9 = arith.truncf %8 : vector<128x128xf32> to vector<128x128xbf16>
    %c0_6 = arith.constant 0 : index
    %c0_7 = arith.constant 0 : index
    %10 = vector.load %arg7[%c0_6, %c0_7] : memref<128x128xbf16, #tpu.memory_space<vmem>>, vector<128x128xbf16>
    tpu.vector_store %arg7[%c0_6, %c0_7], %9 {strides = array<i32>} : memref<128x128xbf16, #tpu.memory_space<vmem>>, vector<128x128xbf16>,
    return
  }
  func.func @transform_0(%arg0: i32, %arg1: i32) -> (i32, i32) {
    %c0_i32 = arith.constant 0 : i32
    %c0_i32_0 = arith.constant 0 : i32
    return %arg0, %c0_i32 : i32, i32
  }
  func.func @transform_1(%arg0: i32, %arg1: i32) -> (i32, i32) {
    %c0_i32 = arith.constant 0 : i32
    %c0_i32_0 = arith.constant 0 : i32
    %c0_i32_1 = arith.constant 0 : i32
    return %c0_i32, %c0_i32_0 : i32, i32
  }
  func.func @transform_2(%arg0: i32, %arg1: i32) -> (i32, i32) {
    %c0_i32 = arith.constant 0 : i32
    %c0_i32_0 = arith.constant 0 : i32
    %c0_i32_1 = arith.constant 0 : i32
    return %c0_i32, %c0_i32_0 : i32, i32
  }
  func.func @transform_3(%arg0: i32, %arg1: i32) -> (i32, i32) {
    %c0_i32 = arith.constant 0 : i32
    %c0_i32_0 = arith.constant 0 : i32
    return %c0_i32, %arg1 : i32, i32
  }
  func.func @transform_4(%arg0: i32, %arg1: i32) -> (i32, i32) {
    %c0_i32 = arith.constant 0 : i32
    %c0_i32_0 = arith.constant 0 : i32
    return %c0_i32, %arg1 : i32, i32
  }
  func.func @transform_5(%arg0: i32, %arg1: i32) -> (i32, i32) {
    %c0_i32 = arith.constant 0 : i32
    return %arg0, %arg1 : i32, i32
  }
}

</mosaic_0001>

<llo_original>
// kernel: policy_and_value_forward.2
$region0: #{policy_and_value_forward.2}
  #allocation0 [shape = 'u32[]', space=smem, size = 0x4, offset = 0x4, fixed_abs, tag = 'smem constant byte address 0x4 - core index']
  #allocation1 [shape = 'u32[72,128]{1,0:T(1,128)}', space=vmem, size = 0x9000, scoped, tag = 'internal scratch']
  #allocation2 [shape = 'f32[128,256]{1,0:T(8,128)}', space=vmem, size = 0x20000, scoped, tag = 'scratch operand']
  #allocation3 [shape = 'f32[1,1]{1,0:T(1,128)S(1)}', space=vmem, size = 0x200, scoped, tag = 'scoped memory for policy_and_value_forward.2']
  %s0 = inlined_call_operand.vmem [shape: bf16[128,256], index: 0, kind: input, shape index: {}]
  %s1 = inlined_call_operand.vmem [shape: bf16[256,256], index: 1, kind: input, shape index: {}]
  %s2 = inlined_call_operand.vmem [shape: f32[1,256], index: 2, kind: input, shape index: {}]
  %s3 = inlined_call_operand.vmem [shape: f32[1,256], index: 3, kind: input, shape index: {}]
  %s4 = inlined_call_operand.<no memory space> [shape: f32[1,1], index: 4, kind: input, shape index: {}]
  %s5 = inlined_call_operand.vmem [shape: f32[128,1], index: 5, kind: output, shape index: {}]
  %s6 = sld [smem:[#allocation0]]
  $region102: #{policy_and_value_forward.2} parent=0
    _
  %s8 = ssub.s32 1, %s6
  %s9 = scalar_select 0, %s8, %s6
  %v10 = vstv %s4
  %11 = vst [vmem:[#allocation3] sm:$0x1] %v10
  $region1: #{policy_and_value_forward.2} parent=0
    #allocation4 [shape = 'u8[65536]{0}', space=vmem, size = 0x10000, scoped, tag = 'input window, operand 0']
    loop: start=0, step=1, limit=4
    $region2: #{policy_and_value_forward.2} parent=1 // loop_pre_header
      _
    $region3: #{policy_and_value_forward.2} parent=1 // loop_header
      %s13 = sphi 0, %s17
      %p14 = scmp.ge.s32.totalorder %s13, 4
      %s20 = sphi 0, %s32
      %s21 = sphi 0, %s28
      %s22 = sphi 0, %s20
      %s23 = sphi 0, %s21
      %s24 = sphi 0, %s22
      %s25 = sphi 0, %s23
      %s37 = sphi 0, %s39
      %s40 = sphi 0, %s37
      %s41 = sphi 0, %s40
      %s57 = sphi 0, %s41
      %s63 = sphi 0, %s65
      %s66 = sphi 0, %s63
      %s67 = sphi 0, %s66
      %s83 = sphi 0, %s67
      %s87 = sphi 0, %s87
      %s89 = sphi 0, %s87
      %s90 = sphi 0, %s89
      %s104 = sphi 0, %s90
      %s108 = sphi 0, %s108
      %s110 = sphi 0, %s108
      %s111 = sphi 0, %s110
      %s125 = sphi 0, %s111
      %s129 = sphi 0, %s129
      %s131 = sphi 0, %s129
      %s132 = sphi 0, %s131
      %s146 = sphi 0, %s132
      %s152 = sphi 0, %s154
      %s155 = sphi 0, %s152
      %s156 = sphi 0, %s155
      %s172 = sphi 0, %s156
    $region4: #{policy_and_value_forward.2} parent=1 // loop_header_branch
      %16 = sbr.rel (%p14) target = $region8
    $region5: #{policy_and_value_forward.2} parent=1 // loop_body
      %s18 = ssub.s32 %s13, 1
      %s19 = ssub.s32 %s13, 2
      %s26 = sadd.s32 1, %s21
      %p27 = scmp.ge.s32.totalorder %s26, 2
      %s28 = scalar_select %p27, 0, %s26
      %s29 = sadd.s32 1, %s20
      %s30 = scalar_select %p27, %s29, %s20
      %p31 = scmp.ge.s32.totalorder %s30, 1
      %s32 = scalar_select %p31, 0, %s30
      %s33 = ssub.s32 %s20, %s32
      %s34 = ssub.s32 %s21, %s28
      %s35 = sor.u32 %s33, %s34
      %p36 = scmp.eq.s32.totalorder %s35, 0
      %s38 = sadd.s32 %s37, 1
      %s39 = scalar_select %p36, %s37, %s38
      %p42 = pneg %p36
      %p43 = scmp.eq.s32.totalorder %s13, 1
      %p44 = por %p42, %p43
      %p45 = scmp.ne.s32.totalorder %s37, %s40
      %p46 = scmp.eq.s32.totalorder %s13, 0
      %p47 = por %p45, %p46
      %p48 = scmp.ne.s32.totalorder %s37, %s40
      %p49 = scmp.eq.s32.totalorder %s18, 1
      %p50 = por %p48, %p49
      %p51 = scmp.ne.s32.totalorder %s40, %s41
      %p52 = scmp.eq.s32.totalorder %s18, 0
      %p53 = por %p51, %p52
      %p54 = scmp.ne.s32.totalorder %s40, %s41
      %p55 = scmp.eq.s32.totalorder %s19, 1
      %p56 = por %p54, %p55
      %p58 = scmp.ne.s32.totalorder %s41, %s57
      %p59 = scmp.eq.s32.totalorder %s19, 0
      %p60 = por %p58, %p59
      %s61 = ssub.s32 %s21, %s28
      %p62 = scmp.eq.s32.totalorder %s61, 0
      %s64 = sadd.s32 %s63, 1
      %s65 = scalar_select %p62, %s63, %s64
      %p68 = pneg %p62
      %p69 = scmp.eq.s32.totalorder %s13, 1
      %p70 = por %p68, %p69
      %p71 = scmp.ne.s32.totalorder %s63, %s66
      %p72 = scmp.eq.s32.totalorder %s13, 0
      %p73 = por %p71, %p72
      %p74 = scmp.ne.s32.totalorder %s63, %s66
      %p75 = scmp.eq.s32.totalorder %s18, 1
      %p76 = por %p74, %p75
      %p77 = scmp.ne.s32.totalorder %s66, %s67
      %p78 = scmp.eq.s32.totalorder %s18, 0
      %p79 = por %p77, %p78
      %p80 = scmp.ne.s32.totalorder %s66, %s67
      %p81 = scmp.eq.s32.totalorder %s19, 1
      %p82 = por %p80, %p81
      %p84 = scmp.ne.s32.totalorder %s67, %s83
      %p85 = scmp.eq.s32.totalorder %s19, 0
      %p86 = por %p84, %p85
      %s88 = sadd.s32 %s87, 1
      %p91 = scmp.eq.s32.totalorder %s13, 1
      %p92 = scmp.ne.s32.totalorder %s87, %s89
      %p93 = scmp.eq.s32.totalorder %s13, 0
      %p94 = por %p92, %p93
      %p95 = scmp.ne.s32.totalorder %s87, %s89
      %p96 = scmp.eq.s32.totalorder %s18, 1
      %p97 = por %p95, %p96
      %p98 = scmp.ne.s32.totalorder %s89, %s90
      %p99 = scmp.eq.s32.totalorder %s18, 0
      %p100 = por %p98, %p99
      %p101 = scmp.ne.s32.totalorder %s89, %s90
      %p102 = scmp.eq.s32.totalorder %s19, 1
      %p103 = por %p101, %p102
      %p105 = scmp.ne.s32.totalorder %s90, %s104
      %p106 = scmp.eq.s32.totalorder %s19, 0
      %p107 = por %p105, %p106
      %s109 = sadd.s32 %s108, 1
      %p112 = scmp.eq.s32.totalorder %s13, 1
      %p113 = scmp.ne.s32.totalorder %s108, %s110
      %p114 = scmp.eq.s32.totalorder %s13, 0
      %p115 = por %p113, %p114
      %p116 = scmp.ne.s32.totalorder %s108, %s110
      %p117 = scmp.eq.s32.totalorder %s18, 1
      %p118 = por %p116, %p117
      %p119 = scmp.ne.s32.totalorder %s110, %s111
      %p120 = scmp.eq.s32.totalorder %s18, 0
      %p121 = por %p119, %p120
      %p122 = scmp.ne.s32.totalorder %s110, %s111
      %p123 = scmp.eq.s32.totalorder %s19, 1
      %p124 = por %p122, %p123
      %p126 = scmp.ne.s32.totalorder %s111, %s125
      %p127 = scmp.eq.s32.totalorder %s19, 0
      %p128 = por %p126, %p127
      %s130 = sadd.s32 %s129, 1
      %p133 = scmp.eq.s32.totalorder %s13, 1
      %p134 = scmp.ne.s32.totalorder %s129, %s131
      %p135 = scmp.eq.s32.totalorder %s13, 0
      %p136 = por %p134, %p135
      %p137 = scmp.ne.s32.totalorder %s129, %s131
      %p138 = scmp.eq.s32.totalorder %s18, 1
      %p139 = por %p137, %p138
      %p140 = scmp.ne.s32.totalorder %s131, %s132
      %p141 = scmp.eq.s32.totalorder %s18, 0
      %p142 = por %p140, %p141
      %p143 = scmp.ne.s32.totalorder %s131, %s132
      %p144 = scmp.eq.s32.totalorder %s19, 1
      %p145 = por %p143, %p144
      %p147 = scmp.ne.s32.totalorder %s132, %s146
      %p148 = scmp.eq.s32.totalorder %s19, 0
      %p149 = por %p147, %p148
      %s150 = ssub.s32 %s20, %s32
      %p151 = scmp.eq.s32.totalorder %s150, 0
      %s153 = sadd.s32 %s152, 1
      %s154 = scalar_select %p151, %s152, %s153
      %p157 = pneg %p151
      %p158 = scmp.eq.s32.totalorder %s13, 1
      %p159 = por %p157, %p158
      %p160 = scmp.ne.s32.totalorder %s152, %s155
      %p161 = scmp.eq.s32.totalorder %s13, 0
      %p162 = por %p160, %p161
      %p163 = scmp.ne.s32.totalorder %s152, %s155
      %p164 = scmp.eq.s32.totalorder %s18, 1
      %p165 = por %p163, %p164
      %p166 = scmp.ne.s32.totalorder %s155, %s156
      %p167 = scmp.eq.s32.totalorder %s18, 0
      %p168 = por %p166, %p167
      %p169 = scmp.ne.s32.totalorder %s155, %s156
      %p170 = scmp.eq.s32.totalorder %s19, 1
      %p171 = por %p169, %p170
      %p173 = scmp.ne.s32.totalorder %s156, %s172
      %p174 = scmp.eq.s32.totalorder %s19, 0
      %p175 = por %p173, %p174
      %p176 = scmp.le.s32.totalorder 1, %s13
      %p177 = scmp.lt.s32.totalorder %s13, 3
      %p178 = pnand %p176, %p177
      %p179 = pneg %p178
      // Predicated region
      $region9: #{policy_and_value_forward.2} parent=5 // pred_check
        _
      $region10: #{policy_and_value_forward.2} parent=5 // pred_check_branch
        %181 = sbr.rel (%p178) target = $region12
      $region11: #{policy_and_value_forward.2} parent=5 // pred_region
        %s182 = ssub.s32 %s13, 1
        // Predicated region
        $region13: #{policy_and_value_forward.2} parent=11 // pred_check
          %p183 = pneg %p100
        $region14: #{policy_and_value_forward.2} parent=11 // pred_check_branch
          %185 = sbr.rel (%p183) target = $region16
        $region15: #{policy_and_value_forward.2} parent=11 // pred_region
          _
        $region16: #{policy_and_value_forward.2} parent=11 // pred_fallthru
          _
        // Predicated region
        $region17: #{policy_and_value_forward.2} parent=11 // pred_check
          %p186 = pneg %p121
        $region18: #{policy_and_value_forward.2} parent=11 // pred_check_branch
          %188 = sbr.rel (%p186) target = $region20
        $region19: #{policy_and_value_forward.2} parent=11 // pred_region
          _
        $region20: #{policy_and_value_forward.2} parent=11 // pred_fallthru
          _
        // Predicated region
        $region21: #{policy_and_value_forward.2} parent=11 // pred_check
          %p189 = pneg %p142
        $region22: #{policy_and_value_forward.2} parent=11 // pred_check_branch
          %191 = sbr.rel (%p189) target = $region24
        $region23: #{policy_and_value_forward.2} parent=11 // pred_region
          _
        $region24: #{policy_and_value_forward.2} parent=11 // pred_fallthru
          _
      $region12: #{policy_and_value_forward.2} parent=5 // pred_fallthru
        _
      %p192 = scmp.lt.s32.totalorder %s13, 2
      // Predicated region
      $region25: #{policy_and_value_forward.2} parent=5 // pred_check
        %p193 = pneg %p192
      $region26: #{policy_and_value_forward.2} parent=5 // pred_check_branch
        %195 = sbr.rel (%p193) target = $region28
      $region27: #{policy_and_value_forward.2} parent=5 // pred_region
        // Predicated region
        $region29: #{policy_and_value_forward.2} parent=27 // pred_check
          %p196 = pneg %p47
        $region30: #{policy_and_value_forward.2} parent=27 // pred_check_branch
          %198 = sbr.rel (%p196) target = $region32
        $region31: #{policy_and_value_forward.2} parent=27 // pred_region
          %s199 = sand.u32 %s37, 1
          %s200 = sand.u32 %s37, 1
          %s201 = smul.addr %s200, 64
          %s202 = scalar_lea.vmem [#allocation4], %s201
          %s203 = smul.u32 16, %s20
          %s204 = smul.addr %s203, 2
          %s205 = sadd.s32 %s21, %s204
          %s206 = smul.addr %s205, 4
          %s207 = scalar_lea.vmem %s0, %s206
          // Predicated region
          $region33: #{policy_and_value_forward.2} parent=31 // pred_check
            _
          $region34: #{policy_and_value_forward.2} parent=31 // pred_check_branch
            %209 = sbr.rel (0) target = $region36
          $region35: #{policy_and_value_forward.2} parent=31 // pred_region
            // Predicated region
            $region37: #{policy_and_value_forward.2} parent=35 // pred_check
              _
            $region38: #{policy_and_value_forward.2} parent=35 // pred_check_branch
              %211 = sbr.rel target = $region40
            $region39: #{policy_and_value_forward.2} parent=35 // pred_region
              // Predicated region
              $region52: #{policy_and_value_forward.2} parent=39 // pred_check
                _
              $region53: #{policy_and_value_forward.2} parent=39 // pred_check_branch
                %257 = sbr.rel (0) target = $region55
              $region54: #{policy_and_value_forward.2} parent=39 // pred_region
                loop: start=0, step=1, limit=1
                $region56: #{policy_and_value_forward.2} parent=54 // loop_pre_header
                  _
                $region57: #{policy_and_value_forward.2} parent=54 // loop_header
                  %s259 = sphi 0, %s263
                  %p260 = scmp.ge.s32.totalorder %s259, 1
                  %s264 = sphi %s207, %s207
                  %s265 = sphi %s202, %s202
                $region58: #{policy_and_value_forward.2} parent=54 // loop_header_branch
                  %262 = sbr.rel (%p260) target = $region62
                $region59: #{policy_and_value_forward.2} parent=54 // loop_body
                  _
                $region60: #{policy_and_value_forward.2} parent=54 // loop_footer
                  %s263 = sadd.s32 1, %s259
                $region61: #{policy_and_value_forward.2} parent=54 // loop_footer_branch
                  %258 = sbr.rel target = $region57
                $region62: #{policy_and_value_forward.2} parent=54 // loop_exit
                  _
                %s267 = ssub.s32 16, 1
                loop: start=0, step=1, limit=1
                $region63: #{policy_and_value_forward.2} parent=54 // loop_pre_header
                  _
                $region64: #{policy_and_value_forward.2} parent=54 // loop_header
                  %s269 = sphi 0, %s273
                  %p270 = scmp.ge.s32.totalorder %s269, 1
                  %s274 = sphi %s207, %s207
                  %s275 = sphi %s202, %s202
                $region65: #{policy_and_value_forward.2} parent=54 // loop_header_branch
                  %272 = sbr.rel (%p270) target = $region69
                $region66: #{policy_and_value_forward.2} parent=54 // loop_body
                  %v276 = vld [vmem:[%s274] sm:%s267]
                  %277 = vst [vmem:[%s275] sm:%s267] %v276
                  %v278 = vld [vmem:[%s274 + $0x8] sm:%s267]
                  %279 = vst [vmem:[%s275 + $0x4] sm:%s267] %v278
                  %v280 = vld [vmem:[%s274 + $0x10] sm:%s267]
                  %281 = vst [vmem:[%s275 + $0x8] sm:%s267] %v280
                  %v282 = vld [vmem:[%s274 + $0x18] sm:%s267]
                  %283 = vst [vmem:[%s275 + $0xc] sm:%s267] %v282
                  %v284 = vld [vmem:[%s274 + $0x20] sm:%s267]
                  %285 = vst [vmem:[%s275 + $0x10] sm:%s267] %v284
                  %v286 = vld [vmem:[%s274 + $0x28] sm:%s267]
                  %287 = vst [vmem:[%s275 + $0x14] sm:%s267] %v286
                  %v288 = vld [vmem:[%s274 + $0x30] sm:%s267]
                  %289 = vst [vmem:[%s275 + $0x18] sm:%s267] %v288
                  %v290 = vld [vmem:[%s274 + $0x38] sm:%s267]
                  %291 = vst [vmem:[%s275 + $0x1c] sm:%s267] %v290
                  %v292 = vld [vmem:[%s274 + $0x40] sm:%s267]
                  %293 = vst [vmem:[%s275 + $0x20] sm:%s267] %v292
                  %v294 = vld [vmem:[%s274 + $0x48] sm:%s267]
                  %295 = vst [vmem:[%s275 + $0x24] sm:%s267] %v294
                  %v296 = vld [vmem:[%s274 + $0x50] sm:%s267]
                  %297 = vst [vmem:[%s275 + $0x28] sm:%s267] %v296
                  %v298 = vld [vmem:[%s274 + $0x58] sm:%s267]
                  %299 = vst [vmem:[%s275 + $0x2c] sm:%s267] %v298
                  %v300 = vld [vmem:[%s274 + $0x60] sm:%s267]
                  %301 = vst [vmem:[%s275 + $0x30] sm:%s267] %v300
                  %v302 = vld [vmem:[%s274 + $0x68] sm:%s267]
                  %303 = vst [vmem:[%s275 + $0x34] sm:%s267] %v302
                  %v304 = vld [vmem:[%s274 + $0x70] sm:%s267]
                  %305 = vst [vmem:[%s275 + $0x38] sm:%s267] %v304
                  %v306 = vld [vmem:[%s274 + $0x78] sm:%s267]
                  %307 = vst [vmem:[%s275 + $0x3c] sm:%s267] %v306
                $region67: #{policy_and_value_forward.2} parent=54 // loop_footer
                  %s273 = sadd.s32 1, %s269
                $region68: #{policy_and_value_forward.2} parent=54 // loop_footer_branch
                  %268 = sbr.rel target = $region64
                $region69: #{policy_and_value_forward.2} parent=54 // loop_exit
                  _
              $region55: #{policy_and_value_forward.2} parent=39 // pred_fallthru
                _
            $region40: #{policy_and_value_forward.2} parent=35 // pred_fallthru
              _
            // Predicated region
            $region41: #{policy_and_value_forward.2} parent=35 // pred_check
              _
            $region42: #{policy_and_value_forward.2} parent=35 // pred_check_branch
              %213 = sbr.rel (0) target = $region44
            $region43: #{policy_and_value_forward.2} parent=35 // pred_region
              %s215 = ssub.s32 16, 1
              loop: start=0, step=1, limit=1
              $region45: #{policy_and_value_forward.2} parent=43 // loop_pre_header
                _
              $region46: #{policy_and_value_forward.2} parent=43 // loop_header
                %s217 = sphi 0, %s221
                %p218 = scmp.ge.s32.totalorder %s217, 1
                %s222 = sphi %s207, %s207
                %s223 = sphi %s202, %s202
              $region47: #{policy_and_value_forward.2} parent=43 // loop_header_branch
                %220 = sbr.rel (%p218) target = $region51
              $region48: #{policy_and_value_forward.2} parent=43 // loop_body
                %v224 = vld [vmem:[%s222] sm:%s215]
                %225 = vst [vmem:[%s223] sm:%s215] %v224
                %v226 = vld [vmem:[%s222 + $0x8] sm:%s215]
                %227 = vst [vmem:[%s223 + $0x4] sm:%s215] %v226
                %v228 = vld [vmem:[%s222 + $0x10] sm:%s215]
                %229 = vst [vmem:[%s223 + $0x8] sm:%s215] %v228
                %v230 = vld [vmem:[%s222 + $0x18] sm:%s215]
                %231 = vst [vmem:[%s223 + $0xc] sm:%s215] %v230
                %v232 = vld [vmem:[%s222 + $0x20] sm:%s215]
                %233 = vst [vmem:[%s223 + $0x10] sm:%s215] %v232
                %v234 = vld [vmem:[%s222 + $0x28] sm:%s215]
                %235 = vst [vmem:[%s223 + $0x14] sm:%s215] %v234
                %v236 = vld [vmem:[%s222 + $0x30] sm:%s215]
                %237 = vst [vmem:[%s223 + $0x18] sm:%s215] %v236
                %v238 = vld [vmem:[%s222 + $0x38] sm:%s215]
                %239 = vst [vmem:[%s223 + $0x1c] sm:%s215] %v238
                %v240 = vld [vmem:[%s222 + $0x40] sm:%s215]
                %241 = vst [vmem:[%s223 + $0x20] sm:%s215] %v240
                %v242 = vld [vmem:[%s222 + $0x48] sm:%s215]
                %243 = vst [vmem:[%s223 + $0x24] sm:%s215] %v242
                %v244 = vld [vmem:[%s222 + $0x50] sm:%s215]
                %245 = vst [vmem:[%s223 + $0x28] sm:%s215] %v244
                %v246 = vld [vmem:[%s222 + $0x58] sm:%s215]
                %247 = vst [vmem:[%s223 + $0x2c] sm:%s215] %v246
                %v248 = vld [vmem:[%s222 + $0x60] sm:%s215]
                %249 = vst [vmem:[%s223 + $0x30] sm:%s215] %v248
                %v250 = vld [vmem:[%s222 + $0x68] sm:%s215]
                %251 = vst [vmem:[%s223 + $0x34] sm:%s215] %v250
                %v252 = vld [vmem:[%s222 + $0x70] sm:%s215]
                %253 = vst [vmem:[%s223 + $0x38] sm:%s215] %v252
                %v254 = vld [vmem:[%s222 + $0x78] sm:%s215]
                %255 = vst [vmem:[%s223 + $0x3c] sm:%s215] %v254
              $region49: #{policy_and_value_forward.2} parent=43 // loop_footer
                %s221 = sadd.s32 1, %s217
              $region50: #{policy_and_value_forward.2} parent=43 // loop_footer_branch
                %216 = sbr.rel target = $region46
              $region51: #{policy_and_value_forward.2} parent=43 // loop_exit
                _
            $region44: #{policy_and_value_forward.2} parent=35 // pred_fallthru
              _
          $region36: #{policy_and_value_forward.2} parent=31 // pred_fallthru
            _
          %308 = vnop
        $region32: #{policy_and_value_forward.2} parent=27 // pred_fallthru
          _
        // Predicated region
        $region70: #{policy_and_value_forward.2} parent=27 // pred_check
          %p309 = pneg %p73
        $region71: #{policy_and_value_forward.2} parent=27 // pred_check_branch
          %311 = sbr.rel (%p309) target = $region73
        $region72: #{policy_and_value_forward.2} parent=27 // pred_region
          %s312 = smul.u32 16, %s21
          %p313 = scmp.lt.s32.totalorder %s312, 31
          %s314 = scalar_select %p313, %s312, 31
          %s315 = smul.addr %s314, 2
          %s316 = smul.addr %s315, 4
          %s317 = scalar_lea.vmem %s1, %s316
          %s318 = smul.u32 16, %s21
        $region73: #{policy_and_value_forward.2} parent=27 // pred_fallthru
          _
      $region28: #{policy_and_value_forward.2} parent=5 // pred_fallthru
        _
      %p319 = scmp.le.s32.totalorder 1, %s13
      %p320 = scmp.lt.s32.totalorder %s13, 3
      %p321 = pnand %p319, %p320
      %p322 = pneg %p321
      // Predicated region
      $region74: #{policy_and_value_forward.2} parent=5 // pred_check
        _
      $region75: #{policy_and_value_forward.2} parent=5 // pred_check_branch
        %324 = sbr.rel (%p321) target = $region77
      $region76: #{policy_and_value_forward.2} parent=5 // pred_region
        %s325 = ssub.s32 %s13, 1
        %s326 = sand.u32 %s40, 1
        %s327 = sand.u32 %s40, 1
        %s328 = smul.addr %s327, 64
        %s329 = scalar_lea.vmem [#allocation4], %s328
        // Predicated region
        $region78: #{policy_and_value_forward.2} parent=76 // pred_check
          %p330 = pneg %p53
        $region79: #{policy_and_value_forward.2} parent=76 // pred_check_branch
          %332 = sbr.rel (%p330) target = $region81
        $region80: #{policy_and_value_forward.2} parent=76 // pred_region
          _
        $region81: #{policy_and_value_forward.2} parent=76 // pred_fallthru
          _
        %s333 = sand.u32 %s40, 1
        %s334 = sand.u32 %s40, 1
        %s335 = smul.addr %s334, 64
        %s336 = scalar_lea.vmem [#allocation4], %s335
        %p337 = pneg %p53
        %p338 = pneg %p50
        %s339 = smul.u32 16, %s23
        %p340 = scmp.lt.s32.totalorder %s339, 31
        %s341 = scalar_select %p340, %s339, 31
        %s342 = smul.addr %s341, 2
        %s343 = smul.addr %s342, 4
        %s344 = scalar_lea.vmem %s1, %s343
        %p345 = pneg %p79
        %p346 = pneg %p76
        %p347 = pneg %p100
        %p348 = pneg %p97
        %p349 = pneg %p121
        %p350 = pneg %p118
        %p351 = pneg %p142
        %p352 = pneg %p139
        %p353 = pneg %p168
        %p354 = pneg %p165
        %s355 = smul.u32 16, %s22
        %p356 = scmp.lt.s32.totalorder %s355, 15
        %s357 = scalar_select %p356, %s355, 15
        %s358 = smul.addr %s357, 8
        %s359 = scalar_lea.vmem %s5, %s358
        %s360 = smul.u32 16, %s22
        %s361 = smul.u32 16, %s23
        %p362 = scmp.lt.s32.totalorder %s361, 31
        %s363 = scalar_select %p362, %s361, 31
        %s364 = smul.addr %s363, 2
        %s365 = smul.addr %s364, 4
        %s366 = scalar_lea.vmem %s1, %s365
        %s367 = smul.u32 16, %s23
        %s368 = smul.u32 16, %s22
        %p369 = scmp.lt.s32.totalorder %s368, 15
        %s370 = scalar_select %p369, %s368, 15
        %s371 = smul.addr %s370, 8
        %s372 = scalar_lea.vmem %s5, %s371
        %s373 = smul.u32 16, %s22
        %p374 = scmp.eq.s32.totalorder %s23, 0
        // Predicated region
        $region82: #{policy_and_value_forward.2} parent=76 // pred_check
          %p375 = pneg %p374
        $region83: #{policy_and_value_forward.2} parent=76 // pred_check_branch
          %377 = sbr.rel (%p375) target = $region85
        $region84: #{policy_and_value_forward.2} parent=76 // pred_region
          %378 = vst [vmem:[#allocation2] sm:$0xff] 0.0
          %379 = vst [vmem:[#allocation2 + $0x8] sm:$0xff] 0.0
          %380 = vst [vmem:[#allocation2 + $0x10] sm:$0xff] 0.0
          %381 = vst [vmem:[#allocation2 + $0x18] sm:$0xff] 0.0
          %382 = vst [vmem:[#allocation2 + $0x20] sm:$0xff] 0.0
          %383 = vst [vmem:[#allocation2 + $0x28] sm:$0xff] 0.0
          %384 = vst [vmem:[#allocation2 + $0x30] sm:$0xff] 0.0
          %385 = vst [vmem:[#allocation2 + $0x38] sm:$0xff] 0.0
          %386 = vst [vmem:[#allocation2 + $0x40] sm:$0xff] 0.0
          %387 = vst [vmem:[#allocation2 + $0x48] sm:$0xff] 0.0
          %388 = vst [vmem:[#allocation2 + $0x50] sm:$0xff] 0.0
          %389 = vst [vmem:[#allocation2 + $0x58] sm:$0xff] 0.0
          %390 = vst [vmem:[#allocation2 + $0x60] sm:$0xff] 0.0
          %391 = vst [vmem:[#allocation2 + $0x68] sm:$0xff] 0.0
          %392 = vst [vmem:[#allocation2 + $0x70] sm:$0xff] 0.0
          %393 = vst [vmem:[#allocation2 + $0x78] sm:$0xff] 0.0
          %394 = vst [vmem:[#allocation2 + $0x80] sm:$0xff] 0.0
          %395 = vst [vmem:[#allocation2 + $0x88] sm:$0xff] 0.0
          %396 = vst [vmem:[#allocation2 + $0x90] sm:$0xff] 0.0
          %397 = vst [vmem:[#allocation2 + $0x98] sm:$0xff] 0.0
          %398 = vst [vmem:[#allocation2 + $0xa0] sm:$0xff] 0.0
          %399 = vst [vmem:[#allocation2 + $0xa8] sm:$0xff] 0.0
          %400 = vst [vmem:[#allocation2 + $0xb0] sm:$0xff] 0.0
          %401 = vst [vmem:[#allocation2 + $0xb8] sm:$0xff] 0.0
          %402 = vst [vmem:[#allocation2 + $0xc0] sm:$0xff] 0.0
          %403 = vst [vmem:[#allocation2 + $0xc8] sm:$0xff] 0.0
          %404 = vst [vmem:[#allocation2 + $0xd0] sm:$0xff] 0.0
          %405 = vst [vmem:[#allocation2 + $0xd8] sm:$0xff] 0.0
          %406 = vst [vmem:[#allocation2 + $0xe0] sm:$0xff] 0.0
          %407 = vst [vmem:[#allocation2 + $0xe8] sm:$0xff] 0.0
          %408 = vst [vmem:[#allocation2 + $0xf0] sm:$0xff] 0.0
          %409 = vst [vmem:[#allocation2 + $0xf8] sm:$0xff] 0.0
        $region85: #{policy_and_value_forward.2} parent=76 // pred_fallthru
          _
        %v410 = vld [vmem:[#allocation2] sm:$0xff]
        %v411 = vld [vmem:[#allocation2 + $0x8] sm:$0xff]
        %v412 = vld [vmem:[#allocation2 + $0x10] sm:$0xff]
        %v413 = vld [vmem:[#allocation2 + $0x18] sm:$0xff]
        %v414 = vld [vmem:[#allocation2 + $0x20] sm:$0xff]
        %v415 = vld [vmem:[#allocation2 + $0x28] sm:$0xff]
        %v416 = vld [vmem:[#allocation2 + $0x30] sm:$0xff]
        %v417 = vld [vmem:[#allocation2 + $0x38] sm:$0xff]
        %v418 = vld [vmem:[#allocation2 + $0x40] sm:$0xff]
        %v419 = vld [vmem:[#allocation2 + $0x48] sm:$0xff]
        %v420 = vld [vmem:[#allocation2 + $0x50] sm:$0xff]
        %v421 = vld [vmem:[#allocation2 + $0x58] sm:$0xff]
        %v422 = vld [vmem:[#allocation2 + $0x60] sm:$0xff]
        %v423 = vld [vmem:[#allocation2 + $0x68] sm:$0xff]
        %v424 = vld [vmem:[#allocation2 + $0x70] sm:$0xff]
        %v425 = vld [vmem:[#allocation2 + $0x78] sm:$0xff]
        %v426 = vld [vmem:[#allocation2 + $0x80] sm:$0xff]
        %v427 = vld [vmem:[#allocation2 + $0x88] sm:$0xff]
        %v428 = vld [vmem:[#allocation2 + $0x90] sm:$0xff]
        %v429 = vld [vmem:[#allocation2 + $0x98] sm:$0xff]
        %v430 = vld [vmem:[#allocation2 + $0xa0] sm:$0xff]
        %v431 = vld [vmem:[#allocation2 + $0xa8] sm:$0xff]
        %v432 = vld [vmem:[#allocation2 + $0xb0] sm:$0xff]
        %v433 = vld [vmem:[#allocation2 + $0xb8] sm:$0xff]
        %v434 = vld [vmem:[#allocation2 + $0xc0] sm:$0xff]
        %v435 = vld [vmem:[#allocation2 + $0xc8] sm:$0xff]
        %v436 = vld [vmem:[#allocation2 + $0xd0] sm:$0xff]
        %v437 = vld [vmem:[#allocation2 + $0xd8] sm:$0xff]
        %v438 = vld [vmem:[#allocation2 + $0xe0] sm:$0xff]
        %v439 = vld [vmem:[#allocation2 + $0xe8] sm:$0xff]
        %v440 = vld [vmem:[#allocation2 + $0xf0] sm:$0xff]
        %v441 = vld [vmem:[#allocation2 + $0xf8] sm:$0xff]
        %v442 = vld [vmem:[%s329] sm:$0xf]
        %v443 = vld [vmem:[%s329 + $0x4] sm:$0xf]
        %v444 = vld [vmem:[%s329 + $0x8] sm:$0xf]
        %v445 = vld [vmem:[%s329 + $0xc] sm:$0xf]
        %v446 = vld [vmem:[%s329 + $0x10] sm:$0xf]
        %v447 = vld [vmem:[%s329 + $0x14] sm:$0xf]
        %v448 = vld [vmem:[%s329 + $0x18] sm:$0xf]
        %v449 = vld [vmem:[%s329 + $0x1c] sm:$0xf]
        %v450 = vld [vmem:[%s329 + $0x20] sm:$0xf]
        %v451 = vld [vmem:[%s329 + $0x24] sm:$0xf]
        %v452 = vld [vmem:[%s329 + $0x28] sm:$0xf]
        %v453 = vld [vmem:[%s329 + $0x2c] sm:$0xf]
        %v454 = vld [vmem:[%s329 + $0x30] sm:$0xf]
        %v455 = vld [vmem:[%s329 + $0x34] sm:$0xf]
        %v456 = vld [vmem:[%s329 + $0x38] sm:$0xf]
        %v457 = vld [vmem:[%s329 + $0x3c] sm:$0xf]
        %v458 = vld [vmem:[%s366] sm:$0xff]
        %v459 = vld [vmem:[%s366 + $0x8] sm:$0xff]
        %v460 = vld [vmem:[%s366 + $0x10] sm:$0xff]
        %v461 = vld [vmem:[%s366 + $0x18] sm:$0xff]
        %v462 = vld [vmem:[%s366 + $0x20] sm:$0xff]
        %v463 = vld [vmem:[%s366 + $0x28] sm:$0xff]
        %v464 = vld [vmem:[%s366 + $0x30] sm:$0xff]
        %v465 = vld [vmem:[%s366 + $0x38] sm:$0xff]
        %v466 = vld [vmem:[%s366 + $0x40] sm:$0xff]
        %v467 = vld [vmem:[%s366 + $0x48] sm:$0xff]
        %v468 = vld [vmem:[%s366 + $0x50] sm:$0xff]
        %v469 = vld [vmem:[%s366 + $0x58] sm:$0xff]
        %v470 = vld [vmem:[%s366 + $0x60] sm:$0xff]
        %v471 = vld [vmem:[%s366 + $0x68] sm:$0xff]
        %v472 = vld [vmem:[%s366 + $0x70] sm:$0xff]
        %v473 = vld [vmem:[%s366 + $0x78] sm:$0xff]
        %v490 = vunpack.c.l.b16 %v442
        %v491 = vunpack.c.l.b16 %v443
        %v492 = vunpack.c.l.b16 %v444
        %v493 = vunpack.c.l.b16 %v445
        %v494 = vunpack.c.l.b16 %v446
        %v495 = vunpack.c.l.b16 %v447
        %v496 = vunpack.c.l.b16 %v448
        %v497 = vunpack.c.l.b16 %v449
        %v498 = vunpack.c.l.b16 %v450
        %v499 = vunpack.c.l.b16 %v451
        %v500 = vunpack.c.l.b16 %v452
        %v501 = vunpack.c.l.b16 %v453
        %v502 = vunpack.c.l.b16 %v454
        %v503 = vunpack.c.l.b16 %v455
        %v504 = vunpack.c.l.b16 %v456
        %v505 = vunpack.c.l.b16 %v457
        %v506 = vpack.c.b16 %v491, %v490
        %v507 = vpack.c.b16 %v493, %v492
        %v508 = vpack.c.b16 %v495, %v494
        %v509 = vpack.c.b16 %v497, %v496
        %v510 = vpack.c.b16 %v499, %v498
        %v511 = vpack.c.b16 %v501, %v500
        %v512 = vpack.c.b16 %v503, %v502
        %v513 = vpack.c.b16 %v505, %v504
        %v538 = vunpack.c.l.b16 %v458
        %v539 = vunpack.c.h.b16 %v458
        %v540 = vunpack.c.l.b16 %v459
        %v541 = vunpack.c.h.b16 %v459
        %v542 = vunpack.c.l.b16 %v460
        %v543 = vunpack.c.h.b16 %v460
        %v544 = vunpack.c.l.b16 %v461
        %v545 = vunpack.c.h.b16 %v461
        %v546 = vunpack.c.l.b16 %v462
        %v547 = vunpack.c.h.b16 %v462
        %v548 = vunpack.c.l.b16 %v463
        %v549 = vunpack.c.h.b16 %v463
        %v550 = vunpack.c.l.b16 %v464
        %v551 = vunpack.c.h.b16 %v464
        %v552 = vunpack.c.l.b16 %v465
        %v553 = vunpack.c.h.b16 %v465
        %v554 = vunpack.c.l.b16 %v466
        %v555 = vunpack.c.h.b16 %v466
        %v556 = vunpack.c.l.b16 %v467
        %v557 = vunpack.c.h.b16 %v467
        %v558 = vunpack.c.l.b16 %v468
        %v559 = vunpack.c.h.b16 %v468
        %v560 = vunpack.c.l.b16 %v469
        %v561 = vunpack.c.h.b16 %v469
        %v562 = vunpack.c.l.b16 %v470
        %v563 = vunpack.c.h.b16 %v470
        %v564 = vunpack.c.l.b16 %v471
        %v565 = vunpack.c.h.b16 %v471
        %v566 = vunpack.c.l.b16 %v472
        %v567 = vunpack.c.h.b16 %v472
        %v568 = vunpack.c.l.b16 %v473
        %v569 = vunpack.c.h.b16 %v473
        %v570 = vpack.c.b16 %v540, %v538
        %v571 = vpack.c.b16 %v541, %v539
        %v572 = vpack.c.b16 %v544, %v542
        %v573 = vpack.c.b16 %v545, %v543
        %v574 = vpack.c.b16 %v548, %v546
        %v575 = vpack.c.b16 %v549, %v547
        %v576 = vpack.c.b16 %v552, %v550
        %v577 = vpack.c.b16 %v553, %v551
        %v578 = vpack.c.b16 %v556, %v554
        %v579 = vpack.c.b16 %v557, %v555
        %v580 = vpack.c.b16 %v560, %v558
        %v581 = vpack.c.b16 %v561, %v559
        %v582 = vpack.c.b16 %v564, %v562
        %v583 = vpack.c.b16 %v565, %v563
        %v584 = vpack.c.b16 %v568, %v566
        %v585 = vpack.c.b16 %v569, %v567
        %602 = vmatpush.bf16.msra.mxu0 %v584
        %603 = vmatpush.bf16.msra.mxu0 %v582
        %604 = vmatpush.bf16.msra.mxu0 %v580
        %605 = vmatpush.bf16.msra.mxu0 %v578
        %606 = vmatpush.bf16.msra.mxu0 %v576
        %607 = vmatpush.bf16.msra.mxu0 %v574
        %608 = vmatpush.bf16.msra.mxu0 %v572
        %609 = vmatpush.bf16.msra.mxu0 %v570
        %610 = vmatmul.bf16.gmra.mxu0 %v506
        %v611 = vpop.f32.mrf.mxu0
        %v612 = vadd.f32 0.0, %v611
        %v613 = vpop.f32.mrf.mxu0
        %v614 = vadd.f32 0.0, %v613
        %615 = vmatmul.bf16.gmra.mxu0 %v507
        %v616 = vpop.f32.mrf.mxu0
        %v617 = vadd.f32 0.0, %v616
        %v618 = vpop.f32.mrf.mxu0
        %v619 = vadd.f32 0.0, %v618
        %620 = vmatmul.bf16.gmra.mxu0 %v508
        %v621 = vpop.f32.mrf.mxu0
        %v622 = vadd.f32 0.0, %v621
        %v623 = vpop.f32.mrf.mxu0
        %v624 = vadd.f32 0.0, %v623
        %625 = vmatmul.bf16.gmra.mxu0 %v509
        %v626 = vpop.f32.mrf.mxu0
        %v627 = vadd.f32 0.0, %v626
        %v628 = vpop.f32.mrf.mxu0
        %v629 = vadd.f32 0.0, %v628
        %630 = vmatmul.bf16.gmra.mxu0 %v510
        %v631 = vpop.f32.mrf.mxu0
        %v632 = vadd.f32 0.0, %v631
        %v633 = vpop.f32.mrf.mxu0
        %v634 = vadd.f32 0.0, %v633
        %635 = vmatmul.bf16.gmra.mxu0 %v511
        %v636 = vpop.f32.mrf.mxu0
        %v637 = vadd.f32 0.0, %v636
        %v638 = vpop.f32.mrf.mxu0
        %v639 = vadd.f32 0.0, %v638
        %640 = vmatmul.bf16.gmra.mxu0 %v512
        %v641 = vpop.f32.mrf.mxu0
        %v642 = vadd.f32 0.0, %v641
        %v643 = vpop.f32.mrf.mxu0
        %v644 = vadd.f32 0.0, %v643
        %645 = vmatmul.bf16.gmra.mxu0 %v513
        %v646 = vpop.f32.mrf.mxu0
        %v647 = vadd.f32 0.0, %v646
        %v648 = vpop.f32.mrf.mxu0
        %v649 = vadd.f32 0.0, %v648
        %650 = vdwg.mxu0
        %651 = vmatpush.bf16.msra.mxu0 %v585
        %652 = vmatpush.bf16.msra.mxu0 %v583
        %653 = vmatpush.bf16.msra.mxu0 %v581
        %654 = vmatpush.bf16.msra.mxu0 %v579
        %655 = vmatpush.bf16.msra.mxu0 %v577
        %656 = vmatpush.bf16.msra.mxu0 %v575
        %657 = vmatpush.bf16.msra.mxu0 %v573
        %658 = vmatpush.bf16.msra.mxu0 %v571
        %659 = vmatmul.bf16.gmra.mxu0 %v506
        %v660 = vpop.f32.mrf.mxu0
        %v661 = vadd.f32 0.0, %v660
        %v662 = vpop.f32.mrf.mxu0
        %v663 = vadd.f32 0.0, %v662
        %664 = vmatmul.bf16.gmra.mxu0 %v507
        %v665 = vpop.f32.mrf.mxu0
        %v666 = vadd.f32 0.0, %v665
        %v667 = vpop.f32.mrf.mxu0
        %v668 = vadd.f32 0.0, %v667
        %669 = vmatmul.bf16.gmra.mxu0 %v508
        %v670 = vpop.f32.mrf.mxu0
        %v671 = vadd.f32 0.0, %v670
        %v672 = vpop.f32.mrf.mxu0
        %v673 = vadd.f32 0.0, %v672
        %674 = vmatmul.bf16.gmra.mxu0 %v509
        %v675 = vpop.f32.mrf.mxu0
        %v676 = vadd.f32 0.0, %v675
        %v677 = vpop.f32.mrf.mxu0
        %v678 = vadd.f32 0.0, %v677
        %679 = vmatmul.bf16.gmra.mxu0 %v510
        %v680 = vpop.f32.mrf.mxu0
        %v681 = vadd.f32 0.0, %v680
        %v682 = vpop.f32.mrf.mxu0
        %v683 = vadd.f32 0.0, %v682
        %684 = vmatmul.bf16.gmra.mxu0 %v511
        %v685 = vpop.f32.mrf.mxu0
        %v686 = vadd.f32 0.0, %v685
        %v687 = vpop.f32.mrf.mxu0
        %v688 = vadd.f32 0.0, %v687
        %689 = vmatmul.bf16.gmra.mxu0 %v512
        %v690 = vpop.f32.mrf.mxu0
        %v691 = vadd.f32 0.0, %v690
        %v692 = vpop.f32.mrf.mxu0
        %v693 = vadd.f32 0.0, %v692
        %694 = vmatmul.bf16.gmra.mxu0 %v513
        %v695 = vpop.f32.mrf.mxu0
        %v696 = vadd.f32 0.0, %v695
        %v697 = vpop.f32.mrf.mxu0
        %v698 = vadd.f32 0.0, %v697
        %699 = vdwg.mxu0
        %v700 = vadd.f32 %v410, %v612
        %v701 = vadd.f32 %v411, %v661
        %v702 = vadd.f32 %v412, %v614
        %v703 = vadd.f32 %v413, %v663
        %v704 = vadd.f32 %v414, %v617
        %v705 = vadd.f32 %v415, %v666
        %v706 = vadd.f32 %v416, %v619
        %v707 = vadd.f32 %v417, %v668
        %v708 = vadd.f32 %v418, %v622
        %v709 = vadd.f32 %v419, %v671
        %v710 = vadd.f32 %v420, %v624
        %v711 = vadd.f32 %v421, %v673
        %v712 = vadd.f32 %v422, %v627
        %v713 = vadd.f32 %v423, %v676
        %v714 = vadd.f32 %v424, %v629
        %v715 = vadd.f32 %v425, %v678
        %v716 = vadd.f32 %v426, %v632
        %v717 = vadd.f32 %v427, %v681
        %v718 = vadd.f32 %v428, %v634
        %v719 = vadd.f32 %v429, %v683
        %v720 = vadd.f32 %v430, %v637
        %v721 = vadd.f32 %v431, %v686
        %v722 = vadd.f32 %v432, %v639
        %v723 = vadd.f32 %v433, %v688
        %v724 = vadd.f32 %v434, %v642
        %v725 = vadd.f32 %v435, %v691
        %v726 = vadd.f32 %v436, %v644
        %v727 = vadd.f32 %v437, %v693
        %v728 = vadd.f32 %v438, %v647
        %v729 = vadd.f32 %v439, %v696
        %v730 = vadd.f32 %v440, %v649
        %v731 = vadd.f32 %v441, %v698
        %732 = vst [vmem:[#allocation2] sm:$0xff] %v700
        %733 = vst [vmem:[#allocation2 + $0x8] sm:$0xff] %v701
        %734 = vst [vmem:[#allocation2 + $0x10] sm:$0xff] %v702
        %735 = vst [vmem:[#allocation2 + $0x18] sm:$0xff] %v703
        %736 = vst [vmem:[#allocation2 + $0x20] sm:$0xff] %v704
        %737 = vst [vmem:[#allocation2 + $0x28] sm:$0xff] %v705
        %738 = vst [vmem:[#allocation2 + $0x30] sm:$0xff] %v706
        %739 = vst [vmem:[#allocation2 + $0x38] sm:$0xff] %v707
        %740 = vst [vmem:[#allocation2 + $0x40] sm:$0xff] %v708
        %741 = vst [vmem:[#allocation2 + $0x48] sm:$0xff] %v709
        %742 = vst [vmem:[#allocation2 + $0x50] sm:$0xff] %v710
        %743 = vst [vmem:[#allocation2 + $0x58] sm:$0xff] %v711
        %744 = vst [vmem:[#allocation2 + $0x60] sm:$0xff] %v712
        %745 = vst [vmem:[#allocation2 + $0x68] sm:$0xff] %v713
        %746 = vst [vmem:[#allocation2 + $0x70] sm:$0xff] %v714
        %747 = vst [vmem:[#allocation2 + $0x78] sm:$0xff] %v715
        %748 = vst [vmem:[#allocation2 + $0x80] sm:$0xff] %v716
        %749 = vst [vmem:[#allocation2 + $0x88] sm:$0xff] %v717
        %750 = vst [vmem:[#allocation2 + $0x90] sm:$0xff] %v718
        %751 = vst [vmem:[#allocation2 + $0x98] sm:$0xff] %v719
        %752 = vst [vmem:[#allocation2 + $0xa0] sm:$0xff] %v720
        %753 = vst [vmem:[#allocation2 + $0xa8] sm:$0xff] %v721
        %754 = vst [vmem:[#allocation2 + $0xb0] sm:$0xff] %v722
        %755 = vst [vmem:[#allocation2 + $0xb8] sm:$0xff] %v723
        %756 = vst [vmem:[#allocation2 + $0xc0] sm:$0xff] %v724
        %757 = vst [vmem:[#allocation2 + $0xc8] sm:$0xff] %v725
        %758 = vst [vmem:[#allocation2 + $0xd0] sm:$0xff] %v726
        %759 = vst [vmem:[#allocation2 + $0xd8] sm:$0xff] %v727
        %760 = vst [vmem:[#allocation2 + $0xe0] sm:$0xff] %v728
        %761 = vst [vmem:[#allocation2 + $0xe8] sm:$0xff] %v729
        %762 = vst [vmem:[#allocation2 + $0xf0] sm:$0xff] %v730
        %763 = vst [vmem:[#allocation2 + $0xf8] sm:$0xff] %v731
        %p764 = scmp.eq.s32.totalorder %s23, 1
        // Predicated region
        $region86: #{policy_and_value_forward.2} parent=76 // pred_check
          %p765 = pneg %p764
        $region87: #{policy_and_value_forward.2} parent=76 // pred_check_branch
          %767 = sbr.rel (%p765) target = $region89
        $region88: #{policy_and_value_forward.2} parent=76 // pred_region
          %v768 = vld [vmem:[#allocation2] sm:$0xff]
          %v769 = vld [vmem:[#allocation2 + $0x8] sm:$0xff]
          %v770 = vld [vmem:[#allocation2 + $0x10] sm:$0xff]
          %v771 = vld [vmem:[#allocation2 + $0x18] sm:$0xff]
          %v772 = vld [vmem:[#allocation2 + $0x20] sm:$0xff]
          %v773 = vld [vmem:[#allocation2 + $0x28] sm:$0xff]
          %v774 = vld [vmem:[#allocation2 + $0x30] sm:$0xff]
          %v775 = vld [vmem:[#allocation2 + $0x38] sm:$0xff]
          %v776 = vld [vmem:[#allocation2 + $0x40] sm:$0xff]
          %v777 = vld [vmem:[#allocation2 + $0x48] sm:$0xff]
          %v778 = vld [vmem:[#allocation2 + $0x50] sm:$0xff]
          %v779 = vld [vmem:[#allocation2 + $0x58] sm:$0xff]
          %v780 = vld [vmem:[#allocation2 + $0x60] sm:$0xff]
          %v781 = vld [vmem:[#allocation2 + $0x68] sm:$0xff]
          %v782 = vld [vmem:[#allocation2 + $0x70] sm:$0xff]
          %v783 = vld [vmem:[#allocation2 + $0x78] sm:$0xff]
          %v784 = vld [vmem:[#allocation2 + $0x80] sm:$0xff]
          %v785 = vld [vmem:[#allocation2 + $0x88] sm:$0xff]
          %v786 = vld [vmem:[#allocation2 + $0x90] sm:$0xff]
          %v787 = vld [vmem:[#allocation2 + $0x98] sm:$0xff]
          %v788 = vld [vmem:[#allocation2 + $0xa0] sm:$0xff]
          %v789 = vld [vmem:[#allocation2 + $0xa8] sm:$0xff]
          %v790 = vld [vmem:[#allocation2 + $0xb0] sm:$0xff]
          %v791 = vld [vmem:[#allocation2 + $0xb8] sm:$0xff]
          %v792 = vld [vmem:[#allocation2 + $0xc0] sm:$0xff]
          %v793 = vld [vmem:[#allocation2 + $0xc8] sm:$0xff]
          %v794 = vld [vmem:[#allocation2 + $0xd0] sm:$0xff]
          %v795 = vld [vmem:[#allocation2 + $0xd8] sm:$0xff]
          %v796 = vld [vmem:[#allocation2 + $0xe0] sm:$0xff]
          %v797 = vld [vmem:[#allocation2 + $0xe8] sm:$0xff]
          %v798 = vld [vmem:[#allocation2 + $0xf0] sm:$0xff]
          %v799 = vld [vmem:[#allocation2 + $0xf8] sm:$0xff]
          %v800 = vld [vmem:[%s2] sm:$0x3]
          %v802 = vperm.slane %v800, 0
          %v803 = vperm.slane %v800, 1
          %v806 = vadd.f32 %v768, %v802
          %v807 = vadd.f32 %v769, %v803
          %v808 = vadd.f32 %v770, %v802
          %v809 = vadd.f32 %v771, %v803
          %v810 = vadd.f32 %v772, %v802
          %v811 = vadd.f32 %v773, %v803
          %v812 = vadd.f32 %v774, %v802
          %v813 = vadd.f32 %v775, %v803
          %v814 = vadd.f32 %v776, %v802
          %v815 = vadd.f32 %v777, %v803
          %v816 = vadd.f32 %v778, %v802
          %v817 = vadd.f32 %v779, %v803
          %v818 = vadd.f32 %v780, %v802
          %v819 = vadd.f32 %v781, %v803
          %v820 = vadd.f32 %v782, %v802
          %v821 = vadd.f32 %v783, %v803
          %v822 = vadd.f32 %v784, %v802
          %v823 = vadd.f32 %v785, %v803
          %v824 = vadd.f32 %v786, %v802
          %v825 = vadd.f32 %v787, %v803
          %v826 = vadd.f32 %v788, %v802
          %v827 = vadd.f32 %v789, %v803
          %v828 = vadd.f32 %v790, %v802
          %v829 = vadd.f32 %v791, %v803
          %v830 = vadd.f32 %v792, %v802
          %v831 = vadd.f32 %v793, %v803
          %v832 = vadd.f32 %v794, %v802
          %v833 = vadd.f32 %v795, %v803
          %v834 = vadd.f32 %v796, %v802
          %v835 = vadd.f32 %v797, %v803
          %v836 = vadd.f32 %v798, %v802
          %v837 = vadd.f32 %v799, %v803
          %v838 = vtanh.pop %v806
          %v839 = vtanh.pop %v807
          %v840 = vtanh.pop %v808
          %v841 = vtanh.pop %v809
          %v842 = vtanh.pop %v810
          %v843 = vtanh.pop %v811
          %v844 = vtanh.pop %v812
          %v845 = vtanh.pop %v813
          %v846 = vtanh.pop %v814
          %v847 = vtanh.pop %v815
          %v848 = vtanh.pop %v816
          %v849 = vtanh.pop %v817
          %v850 = vtanh.pop %v818
          %v851 = vtanh.pop %v819
          %v852 = vtanh.pop %v820
          %v853 = vtanh.pop %v821
          %v854 = vtanh.pop %v822
          %v855 = vtanh.pop %v823
          %v856 = vtanh.pop %v824
          %v857 = vtanh.pop %v825
          %v858 = vtanh.pop %v826
          %v859 = vtanh.pop %v827
          %v860 = vtanh.pop %v828
          %v861 = vtanh.pop %v829
          %v862 = vtanh.pop %v830
          %v863 = vtanh.pop %v831
          %v864 = vtanh.pop %v832
          %v865 = vtanh.pop %v833
          %v866 = vtanh.pop %v834
          %v867 = vtanh.pop %v835
          %v868 = vtanh.pop %v836
          %v869 = vtanh.pop %v837
          %v870 = vld [vmem:[%s3] sm:$0x3]
          %v872 = vperm.slane %v870, 0
          %v873 = vperm.slane %v870, 1
          %v876 = vmul.f32 %v838, %v872
          %v877 = vmul.f32 %v839, %v873
          %v878 = vmul.f32 %v840, %v872
          %v879 = vmul.f32 %v841, %v873
          %v880 = vmul.f32 %v842, %v872
          %v881 = vmul.f32 %v843, %v873
          %v882 = vmul.f32 %v844, %v872
          %v883 = vmul.f32 %v845, %v873
          %v884 = vmul.f32 %v846, %v872
          %v885 = vmul.f32 %v847, %v873
          %v886 = vmul.f32 %v848, %v872
          %v887 = vmul.f32 %v849, %v873
          %v888 = vmul.f32 %v850, %v872
          %v889 = vmul.f32 %v851, %v873
          %v890 = vmul.f32 %v852, %v872
          %v891 = vmul.f32 %v853, %v873
          %v892 = vmul.f32 %v854, %v872
          %v893 = vmul.f32 %v855, %v873
          %v894 = vmul.f32 %v856, %v872
          %v895 = vmul.f32 %v857, %v873
          %v896 = vmul.f32 %v858, %v872
          %v897 = vmul.f32 %v859, %v873
          %v898 = vmul.f32 %v860, %v872
          %v899 = vmul.f32 %v861, %v873
          %v900 = vmul.f32 %v862, %v872
          %v901 = vmul.f32 %v863, %v873
          %v902 = vmul.f32 %v864, %v872
          %v903 = vmul.f32 %v865, %v873
          %v904 = vmul.f32 %v866, %v872
          %v905 = vmul.f32 %v867, %v873
          %v906 = vmul.f32 %v868, %v872
          %v907 = vmul.f32 %v869, %v873
          %v908 = vadd.f32 %v876, %v877
          %909 = vadd.xlane.f32.xlu0 %v908
          %v910 = vpop.xlane.xlu0 %909
          %v911 = vadd.f32 %v878, %v879
          %912 = vadd.xlane.f32.xlu0 %v911
          %v913 = vpop.xlane.xlu0 %912
          %v914 = vadd.f32 %v880, %v881
          %915 = vadd.xlane.f32.xlu0 %v914
          %v916 = vpop.xlane.xlu0 %915
          %v917 = vadd.f32 %v882, %v883
          %918 = vadd.xlane.f32.xlu0 %v917
          %v919 = vpop.xlane.xlu0 %918
          %v920 = vadd.f32 %v884, %v885
          %921 = vadd.xlane.f32.xlu0 %v920
          %v922 = vpop.xlane.xlu0 %921
          %v923 = vadd.f32 %v886, %v887
          %924 = vadd.xlane.f32.xlu0 %v923
          %v925 = vpop.xlane.xlu0 %924
          %v926 = vadd.f32 %v888, %v889
          %927 = vadd.xlane.f32.xlu0 %v926
          %v928 = vpop.xlane.xlu0 %927
          %v929 = vadd.f32 %v890, %v891
          %930 = vadd.xlane.f32.xlu0 %v929
          %v931 = vpop.xlane.xlu0 %930
          %v932 = vadd.f32 %v892, %v893
          %933 = vadd.xlane.f32.xlu0 %v932
          %v934 = vpop.xlane.xlu0 %933
          %v935 = vadd.f32 %v894, %v895
          %936 = vadd.xlane.f32.xlu0 %v935
          %v937 = vpop.xlane.xlu0 %936
          %v938 = vadd.f32 %v896, %v897
          %939 = vadd.xlane.f32.xlu0 %v938
          %v940 = vpop.xlane.xlu0 %939
          %v941 = vadd.f32 %v898, %v899
          %942 = vadd.xlane.f32.xlu0 %v941
          %v943 = vpop.xlane.xlu0 %942
          %v944 = vadd.f32 %v900, %v901
          %945 = vadd.xlane.f32.xlu0 %v944
          %v946 = vpop.xlane.xlu0 %945
          %v947 = vadd.f32 %v902, %v903
          %948 = vadd.xlane.f32.xlu0 %v947
          %v949 = vpop.xlane.xlu0 %948
          %v950 = vadd.f32 %v904, %v905
          %951 = vadd.xlane.f32.xlu0 %v950
          %v952 = vpop.xlane.xlu0 %951
          %v953 = vadd.f32 %v906, %v907
          %954 = vadd.xlane.f32.xlu0 %v953
          %v955 = vpop.xlane.xlu0 %954
          %v956 = vld [vmem:[#allocation3] sm:$0x1]
          %v958 = vperm.slane %v956, 0
          %v960 = vadd.f32 %v910, %v958
          %v961 = vadd.f32 %v913, %v958
          %v962 = vadd.f32 %v916, %v958
          %v963 = vadd.f32 %v919, %v958
          %v964 = vadd.f32 %v922, %v958
          %v965 = vadd.f32 %v925, %v958
          %v966 = vadd.f32 %v928, %v958
          %v967 = vadd.f32 %v931, %v958
          %v968 = vadd.f32 %v934, %v958
          %v969 = vadd.f32 %v937, %v958
          %v970 = vadd.f32 %v940, %v958
          %v971 = vadd.f32 %v943, %v958
          %v972 = vadd.f32 %v946, %v958
          %v973 = vadd.f32 %v949, %v958
          %v974 = vadd.f32 %v952, %v958
          %v975 = vadd.f32 %v955, %v958
          %vm976 = vcmask 7168
          %977 = vst.msk [vmem:[%s372] sm:$0xff] %vm976, %v960
          %978 = vst.msk [vmem:[%s372 + $0x8] sm:$0xff] %vm976, %v961
          %979 = vst.msk [vmem:[%s372 + $0x10] sm:$0xff] %vm976, %v962
          %980 = vst.msk [vmem:[%s372 + $0x18] sm:$0xff] %vm976, %v963
          %981 = vst.msk [vmem:[%s372 + $0x20] sm:$0xff] %vm976, %v964
          %982 = vst.msk [vmem:[%s372 + $0x28] sm:$0xff] %vm976, %v965
          %983 = vst.msk [vmem:[%s372 + $0x30] sm:$0xff] %vm976, %v966
          %984 = vst.msk [vmem:[%s372 + $0x38] sm:$0xff] %vm976, %v967
          %985 = vst.msk [vmem:[%s372 + $0x40] sm:$0xff] %vm976, %v968
          %986 = vst.msk [vmem:[%s372 + $0x48] sm:$0xff] %vm976, %v969
          %987 = vst.msk [vmem:[%s372 + $0x50] sm:$0xff] %vm976, %v970
          %988 = vst.msk [vmem:[%s372 + $0x58] sm:$0xff] %vm976, %v971
          %989 = vst.msk [vmem:[%s372 + $0x60] sm:$0xff] %vm976, %v972
          %990 = vst.msk [vmem:[%s372 + $0x68] sm:$0xff] %vm976, %v973
          %991 = vst.msk [vmem:[%s372 + $0x70] sm:$0xff] %vm976, %v974
          %992 = vst.msk [vmem:[%s372 + $0x78] sm:$0xff] %vm976, %v975
        $region89: #{policy_and_value_forward.2} parent=76 // pred_fallthru
          _
        %s993 = smul.u32 16, %s22
        %p994 = scmp.lt.s32.totalorder %s993, 15
        %s995 = scalar_select %p994, %s993, 15
        %s996 = smul.addr %s995, 8
        %s997 = scalar_lea.vmem %s5, %s996
        // Predicated region
        $region90: #{policy_and_value_forward.2} parent=76 // pred_check
          %p998 = pneg %p165
        $region91: #{policy_and_value_forward.2} parent=76 // pred_check_branch
          %1000 = sbr.rel (%p998) target = $region93
        $region92: #{policy_and_value_forward.2} parent=76 // pred_region
          %s1001 = smul.u32 16, %s22
        $region93: #{policy_and_value_forward.2} parent=76 // pred_fallthru
          _
        // Predicated region
        $region94: #{policy_and_value_forward.2} parent=76 // pred_check
          %p1002 = pneg %p165
        $region95: #{policy_and_value_forward.2} parent=76 // pred_check_branch
          %1004 = sbr.rel (%p1002) target = $region97
        $region96: #{policy_and_value_forward.2} parent=76 // pred_region
          %s1005 = smul.u32 16, %s22
          %p1006 = scmp.lt.s32.totalorder %s1005, 15
          %s1007 = scalar_select %p1006, %s1005, 15
          %s1008 = smul.addr %s1007, 8
          %s1009 = scalar_lea.vmem %s5, %s1008
        $region97: #{policy_and_value_forward.2} parent=76 // pred_fallthru
          _
      $region77: #{policy_and_value_forward.2} parent=5 // pred_fallthru
        _
      %p1010 = scmp.le.s32.totalorder 2, %s13
      // Predicated region
      $region98: #{policy_and_value_forward.2} parent=5 // pred_check
        %p1011 = pneg %p1010
      $region99: #{policy_and_value_forward.2} parent=5 // pred_check_branch
        %1013 = sbr.rel (%p1011) target = $region101
      $region100: #{policy_and_value_forward.2} parent=5 // pred_region
        %s1014 = ssub.s32 %s13, 2
      $region101: #{policy_and_value_forward.2} parent=5 // pred_fallthru
        _
    $region6: #{policy_and_value_forward.2} parent=1 // loop_footer
      %s17 = sadd.s32 1, %s13
    $region7: #{policy_and_value_forward.2} parent=1 // loop_footer_branch
      %12 = sbr.rel target = $region3
    $region8: #{policy_and_value_forward.2} parent=1 // loop_exit
      _

// kernel: policy_and_value_forward.3
$region0: #{policy_and_value_forward.3}
  #allocation0 [shape = 'u32[]', space=smem, size = 0x4, offset = 0x4, fixed_abs, tag = 'smem constant byte address 0x4 - core index']
  #allocation1 [shape = 'u32[72,128]{1,0:T(1,128)}', space=vmem, size = 0x9000, scoped, tag = 'internal scratch']
  #allocation2 [shape = 'bf16[128,256]{1,0:T(8,128)(2,1)}', space=vmem, size = 0x10000, scoped, tag = 'scratch operand']
  %s0 = inlined_call_operand.vmem [shape: bf16[128,256], index: 0, kind: input, shape index: {}]
  %s1 = inlined_call_operand.vmem [shape: bf16[256,256], index: 1, kind: input, shape index: {}]
  %s2 = inlined_call_operand.vmem [shape: f32[1,256], index: 2, kind: input, shape index: {}]
  %s3 = inlined_call_operand.vmem [shape: bf16[256,512], index: 3, kind: input, shape index: {}]
  %s4 = inlined_call_operand.vmem [shape: f32[1,512], index: 4, kind: input, shape index: {}]
  %s5 = inlined_call_operand.hbm [shape: bf16[128,512], index: 5, kind: output, shape index: {}]
  %s6 = sld [smem:[#allocation0]]
  $region98: #{policy_and_value_forward.3} parent=0
    _
  %s8 = ssub.s32 1, %s6
  %s9 = scalar_select 0, %s8, %s6
  $region1: #{policy_and_value_forward.3} parent=0
    #allocation3 [shape = 'u8[131072]{0}', space=vmem, size = 0x20000, scoped, tag = 'input window, operand 3']
    #allocation4 [shape = 'u8[65536]{0}', space=vmem, size = 0x10000, scoped, tag = 'output window, operand 0']
    #allocation5 [shape = 's32[2]{0}', space=sflag, size = 0x8, scoped, tag = 'scoped memory for policy_and_value_forward.3']
    %10 = vsyncpa [#allocation5], 0
    %s11 = scalar_lea.sflag [#allocation5], 1
    %12 = vsyncpa %s11, 0
    loop: start=0, step=1, limit=6
    $region2: #{policy_and_value_forward.3} parent=1 // loop_pre_header
      _
    $region3: #{policy_and_value_forward.3} parent=1 // loop_header
      %s14 = sphi 0, %s18
      %p15 = scmp.ge.s32.totalorder %s14, 6
      %s21 = sphi 0, %s33
      %s22 = sphi 0, %s29
      %s23 = sphi 0, %s21
      %s24 = sphi 0, %s22
      %s25 = sphi 0, %s23
      %s26 = sphi 0, %s24
      %s36 = sphi 0, %s38
      %s39 = sphi 0, %s36
      %s40 = sphi 0, %s39
      %s56 = sphi 0, %s40
      %s60 = sphi 0, %s60
      %s62 = sphi 0, %s60
      %s63 = sphi 0, %s62
      %s77 = sphi 0, %s63
      %s81 = sphi 0, %s81
      %s83 = sphi 0, %s81
      %s84 = sphi 0, %s83
      %s98 = sphi 0, %s84
      %s104 = sphi 0, %s106
      %s107 = sphi 0, %s104
      %s108 = sphi 0, %s107
      %s124 = sphi 0, %s108
      %s130 = sphi 0, %s132
      %s133 = sphi 0, %s130
      %s134 = sphi 0, %s133
      %s150 = sphi 0, %s134
      %s158 = sphi 0, %s160
      %s161 = sphi 0, %s158
      %s162 = sphi 0, %s161
      %s178 = sphi 0, %s162
    $region4: #{policy_and_value_forward.3} parent=1 // loop_header_branch
      %17 = sbr.rel (%p15) target = $region8
    $region5: #{policy_and_value_forward.3} parent=1 // loop_body
      %s19 = ssub.s32 %s14, 1
      %s20 = ssub.s32 %s14, 2
      %s27 = sadd.s32 1, %s22
      %p28 = scmp.ge.s32.totalorder %s27, 4
      %s29 = scalar_select %p28, 0, %s27
      %s30 = sadd.s32 1, %s21
      %s31 = scalar_select %p28, %s30, %s21
      %p32 = scmp.ge.s32.totalorder %s31, 1
      %s33 = scalar_select %p32, 0, %s31
      %s34 = ssub.s32 %s21, %s33
      %p35 = scmp.eq.s32.totalorder %s34, 0
      %s37 = sadd.s32 %s36, 1
      %s38 = scalar_select %p35, %s36, %s37
      %p41 = pneg %p35
      %p42 = scmp.eq.s32.totalorder %s14, 3
      %p43 = por %p41, %p42
      %p44 = scmp.ne.s32.totalorder %s36, %s39
      %p45 = scmp.eq.s32.totalorder %s14, 0
      %p46 = por %p44, %p45
      %p47 = scmp.ne.s32.totalorder %s36, %s39
      %p48 = scmp.eq.s32.totalorder %s19, 3
      %p49 = por %p47, %p48
      %p50 = scmp.ne.s32.totalorder %s39, %s40
      %p51 = scmp.eq.s32.totalorder %s19, 0
      %p52 = por %p50, %p51
      %p53 = scmp.ne.s32.totalorder %s39, %s40
      %p54 = scmp.eq.s32.totalorder %s20, 3
      %p55 = por %p53, %p54
      %p57 = scmp.ne.s32.totalorder %s40, %s56
      %p58 = scmp.eq.s32.totalorder %s20, 0
      %p59 = por %p57, %p58
      %s61 = sadd.s32 %s60, 1
      %p64 = scmp.eq.s32.totalorder %s14, 3
      %p65 = scmp.ne.s32.totalorder %s60, %s62
      %p66 = scmp.eq.s32.totalorder %s14, 0
      %p67 = por %p65, %p66
      %p68 = scmp.ne.s32.totalorder %s60, %s62
      %p69 = scmp.eq.s32.totalorder %s19, 3
      %p70 = por %p68, %p69
      %p71 = scmp.ne.s32.totalorder %s62, %s63
      %p72 = scmp.eq.s32.totalorder %s19, 0
      %p73 = por %p71, %p72
      %p74 = scmp.ne.s32.totalorder %s62, %s63
      %p75 = scmp.eq.s32.totalorder %s20, 3
      %p76 = por %p74, %p75
      %p78 = scmp.ne.s32.totalorder %s63, %s77
      %p79 = scmp.eq.s32.totalorder %s20, 0
      %p80 = por %p78, %p79
      %s82 = sadd.s32 %s81, 1
      %p85 = scmp.eq.s32.totalorder %s14, 3
      %p86 = scmp.ne.s32.totalorder %s81, %s83
      %p87 = scmp.eq.s32.totalorder %s14, 0
      %p88 = por %p86, %p87
      %p89 = scmp.ne.s32.totalorder %s81, %s83
      %p90 = scmp.eq.s32.totalorder %s19, 3
      %p91 = por %p89, %p90
      %p92 = scmp.ne.s32.totalorder %s83, %s84
      %p93 = scmp.eq.s32.totalorder %s19, 0
      %p94 = por %p92, %p93
      %p95 = scmp.ne.s32.totalorder %s83, %s84
      %p96 = scmp.eq.s32.totalorder %s20, 3
      %p97 = por %p95, %p96
      %p99 = scmp.ne.s32.totalorder %s84, %s98
      %p100 = scmp.eq.s32.totalorder %s20, 0
      %p101 = por %p99, %p100
      %s102 = ssub.s32 %s22, %s29
      %p103 = scmp.eq.s32.totalorder %s102, 0
      %s105 = sadd.s32 %s104, 1
      %s106 = scalar_select %p103, %s104, %s105
      %p109 = pneg %p103
      %p110 = scmp.eq.s32.totalorder %s14, 3
      %p111 = por %p109, %p110
      %p112 = scmp.ne.s32.totalorder %s104, %s107
      %p113 = scmp.eq.s32.totalorder %s14, 0
      %p114 = por %p112, %p113
      %p115 = scmp.ne.s32.totalorder %s104, %s107
      %p116 = scmp.eq.s32.totalorder %s19, 3
      %p117 = por %p115, %p116
      %p118 = scmp.ne.s32.totalorder %s107, %s108
      %p119 = scmp.eq.s32.totalorder %s19, 0
      %p120 = por %p118, %p119
      %p121 = scmp.ne.s32.totalorder %s107, %s108
      %p122 = scmp.eq.s32.totalorder %s20, 3
      %p123 = por %p121, %p122
      %p125 = scmp.ne.s32.totalorder %s108, %s124
      %p126 = scmp.eq.s32.totalorder %s20, 0
      %p127 = por %p125, %p126
      %s128 = ssub.s32 %s22, %s29
      %p129 = scmp.eq.s32.totalorder %s128, 0
      %s131 = sadd.s32 %s130, 1
      %s132 = scalar_select %p129, %s130, %s131
      %p135 = pneg %p129
      %p136 = scmp.eq.s32.totalorder %s14, 3
      %p137 = por %p135, %p136
      %p138 = scmp.ne.s32.totalorder %s130, %s133
      %p139 = scmp.eq.s32.totalorder %s14, 0
      %p140 = por %p138, %p139
      %p141 = scmp.ne.s32.totalorder %s130, %s133
      %p142 = scmp.eq.s32.totalorder %s19, 3
      %p143 = por %p141, %p142
      %p144 = scmp.ne.s32.totalorder %s133, %s134
      %p145 = scmp.eq.s32.totalorder %s19, 0
      %p146 = por %p144, %p145
      %p147 = scmp.ne.s32.totalorder %s133, %s134
      %p148 = scmp.eq.s32.totalorder %s20, 3
      %p149 = por %p147, %p148
      %p151 = scmp.ne.s32.totalorder %s134, %s150
      %p152 = scmp.eq.s32.totalorder %s20, 0
      %p153 = por %p151, %p152
      %s154 = ssub.s32 %s21, %s33
      %s155 = ssub.s32 %s22, %s29
      %s156 = sor.u32 %s154, %s155
      %p157 = scmp.eq.s32.totalorder %s156, 0
      %s159 = sadd.s32 %s158, 1
      %s160 = scalar_select %p157, %s158, %s159
      %p163 = pneg %p157
      %p164 = scmp.eq.s32.totalorder %s14, 3
      %p165 = por %p163, %p164
      %p166 = scmp.ne.s32.totalorder %s158, %s161
      %p167 = scmp.eq.s32.totalorder %s14, 0
      %p168 = por %p166, %p167
      %p169 = scmp.ne.s32.totalorder %s158, %s161
      %p170 = scmp.eq.s32.totalorder %s19, 3
      %p171 = por %p169, %p170
      %p172 = scmp.ne.s32.totalorder %s161, %s162
      %p173 = scmp.eq.s32.totalorder %s19, 0
      %p174 = por %p172, %p173
      %p175 = scmp.ne.s32.totalorder %s161, %s162
      %p176 = scmp.eq.s32.totalorder %s20, 3
      %p177 = por %p175, %p176
      %p179 = scmp.ne.s32.totalorder %s162, %s178
      %p180 = scmp.eq.s32.totalorder %s20, 0
      %p181 = por %p179, %p180
      %p182 = scmp.le.s32.totalorder 1, %s14
      %p183 = scmp.lt.s32.totalorder %s14, 5
      %p184 = pnand %p182, %p183
      %p185 = pneg %p184
      // Predicated region
      $region9: #{policy_and_value_forward.3} parent=5 // pred_check
        _
      $region10: #{policy_and_value_forward.3} parent=5 // pred_check_branch
        %187 = sbr.rel (%p184) target = $region12
      $region11: #{policy_and_value_forward.3} parent=5 // pred_region
        %s188 = ssub.s32 %s14, 1
        // Predicated region
        $region13: #{policy_and_value_forward.3} parent=11 // pred_check
          %p189 = pneg %p52
        $region14: #{policy_and_value_forward.3} parent=11 // pred_check_branch
          %191 = sbr.rel (%p189) target = $region16
        $region15: #{policy_and_value_forward.3} parent=11 // pred_region
          %s192 = smul.u32 16, %s23
          %p193 = scmp.lt.s32.totalorder %s192, 15
          %s194 = scalar_select %p193, %s192, 15
          %s195 = smul.addr %s194, 2
          %s196 = smul.addr %s195, 4
          %s197 = scalar_lea.vmem %s0, %s196
          %s198 = smul.u32 16, %s23
        $region16: #{policy_and_value_forward.3} parent=11 // pred_fallthru
          _
        // Predicated region
        $region17: #{policy_and_value_forward.3} parent=11 // pred_check
          %p199 = pneg %p73
        $region18: #{policy_and_value_forward.3} parent=11 // pred_check_branch
          %201 = sbr.rel (%p199) target = $region20
        $region19: #{policy_and_value_forward.3} parent=11 // pred_region
          _
        $region20: #{policy_and_value_forward.3} parent=11 // pred_fallthru
          _
        // Predicated region
        $region21: #{policy_and_value_forward.3} parent=11 // pred_check
          %p202 = pneg %p94
        $region22: #{policy_and_value_forward.3} parent=11 // pred_check_branch
          %204 = sbr.rel (%p202) target = $region24
        $region23: #{policy_and_value_forward.3} parent=11 // pred_region
          _
        $region24: #{policy_and_value_forward.3} parent=11 // pred_fallthru
          _
      $region12: #{policy_and_value_forward.3} parent=5 // pred_fallthru
        _
      %p205 = scmp.lt.s32.totalorder %s14, 4
      // Predicated region
      $region25: #{policy_and_value_forward.3} parent=5 // pred_check
        %p206 = pneg %p205
      $region26: #{policy_and_value_forward.3} parent=5 // pred_check_branch
        %208 = sbr.rel (%p206) target = $region28
      $region27: #{policy_and_value_forward.3} parent=5 // pred_region
        // Predicated region
        $region29: #{policy_and_value_forward.3} parent=27 // pred_check
          %p209 = pneg %p114
        $region30: #{policy_and_value_forward.3} parent=27 // pred_check_branch
          %211 = sbr.rel (%p209) target = $region32
        $region31: #{policy_and_value_forward.3} parent=27 // pred_region
          %s212 = sand.u32 %s104, 1
          %s213 = sand.u32 %s104, 1
          %s214 = smul.addr %s213, 128
          %s215 = scalar_lea.vmem [#allocation3], %s214
          %s216 = smul.addr %s22, 4
          %s217 = scalar_lea.vmem %s3, %s216
          // Predicated region
          $region33: #{policy_and_value_forward.3} parent=31 // pred_check
            _
          $region34: #{policy_and_value_forward.3} parent=31 // pred_check_branch
            %219 = sbr.rel (0) target = $region36
          $region35: #{policy_and_value_forward.3} parent=31 // pred_region
            // Predicated region
            $region37: #{policy_and_value_forward.3} parent=35 // pred_check
              _
            $region38: #{policy_and_value_forward.3} parent=35 // pred_check_branch
              %221 = sbr.rel target = $region40
            $region39: #{policy_and_value_forward.3} parent=35 // pred_region
              // Predicated region
              $region52: #{policy_and_value_forward.3} parent=39 // pred_check
                _
              $region53: #{policy_and_value_forward.3} parent=39 // pred_check_branch
                %299 = sbr.rel (0) target = $region55
              $region54: #{policy_and_value_forward.3} parent=39 // pred_region
                loop: start=0, step=1, limit=1
                $region56: #{policy_and_value_forward.3} parent=54 // loop_pre_header
                  _
                $region57: #{policy_and_value_forward.3} parent=54 // loop_header
                  %s301 = sphi 0, %s305
                  %p302 = scmp.ge.s32.totalorder %s301, 1
                  %s306 = sphi %s217, %s217
                  %s307 = sphi %s215, %s215
                $region58: #{policy_and_value_forward.3} parent=54 // loop_header_branch
                  %304 = sbr.rel (%p302) target = $region62
                $region59: #{policy_and_value_forward.3} parent=54 // loop_body
                  _
                $region60: #{policy_and_value_forward.3} parent=54 // loop_footer
                  %s305 = sadd.s32 1, %s301
                $region61: #{policy_and_value_forward.3} parent=54 // loop_footer_branch
                  %300 = sbr.rel target = $region57
                $region62: #{policy_and_value_forward.3} parent=54 // loop_exit
                  _
                %s309 = ssub.s32 16, 1
                loop: start=0, step=1, limit=1
                $region63: #{policy_and_value_forward.3} parent=54 // loop_pre_header
                  _
                $region64: #{policy_and_value_forward.3} parent=54 // loop_header
                  %s311 = sphi 0, %s315
                  %p312 = scmp.ge.s32.totalorder %s311, 1
                  %s316 = sphi %s217, %s217
                  %s317 = sphi %s215, %s215
                $region65: #{policy_and_value_forward.3} parent=54 // loop_header_branch
                  %314 = sbr.rel (%p312) target = $region69
                $region66: #{policy_and_value_forward.3} parent=54 // loop_body
                  %v318 = vld [vmem:[%s316] sm:%s309]
                  %319 = vst [vmem:[%s317] sm:%s309] %v318
                  %v320 = vld [vmem:[%s316 + $0x10] sm:%s309]
                  %321 = vst [vmem:[%s317 + $0x4] sm:%s309] %v320
                  %v322 = vld [vmem:[%s316 + $0x20] sm:%s309]
                  %323 = vst [vmem:[%s317 + $0x8] sm:%s309] %v322
                  %v324 = vld [vmem:[%s316 + $0x30] sm:%s309]
                  %325 = vst [vmem:[%s317 + $0xc] sm:%s309] %v324
                  %v326 = vld [vmem:[%s316 + $0x40] sm:%s309]
                  %327 = vst [vmem:[%s317 + $0x10] sm:%s309] %v326
                  %v328 = vld [vmem:[%s316 + $0x50] sm:%s309]
                  %329 = vst [vmem:[%s317 + $0x14] sm:%s309] %v328
                  %v330 = vld [vmem:[%s316 + $0x60] sm:%s309]
                  %331 = vst [vmem:[%s317 + $0x18] sm:%s309] %v330
                  %v332 = vld [vmem:[%s316 + $0x70] sm:%s309]
                  %333 = vst [vmem:[%s317 + $0x1c] sm:%s309] %v332
                  %v334 = vld [vmem:[%s316 + $0x80] sm:%s309]
                  %335 = vst [vmem:[%s317 + $0x20] sm:%s309] %v334
                  %v336 = vld [vmem:[%s316 + $0x90] sm:%s309]
                  %337 = vst [vmem:[%s317 + $0x24] sm:%s309] %v336
                  %v338 = vld [vmem:[%s316 + $0xa0] sm:%s309]
                  %339 = vst [vmem:[%s317 + $0x28] sm:%s309] %v338
                  %v340 = vld [vmem:[%s316 + $0xb0] sm:%s309]
                  %341 = vst [vmem:[%s317 + $0x2c] sm:%s309] %v340
                  %v342 = vld [vmem:[%s316 + $0xc0] sm:%s309]
                  %343 = vst [vmem:[%s317 + $0x30] sm:%s309] %v342
                  %v344 = vld [vmem:[%s316 + $0xd0] sm:%s309]
                  %345 = vst [vmem:[%s317 + $0x34] sm:%s309] %v344
                  %v346 = vld [vmem:[%s316 + $0xe0] sm:%s309]
                  %347 = vst [vmem:[%s317 + $0x38] sm:%s309] %v346
                  %v348 = vld [vmem:[%s316 + $0xf0] sm:%s309]
                  %349 = vst [vmem:[%s317 + $0x3c] sm:%s309] %v348
                  %v350 = vld [vmem:[%s316 + $0x100] sm:%s309]
                  %351 = vst [vmem:[%s317 + $0x40] sm:%s309] %v350
                  %v352 = vld [vmem:[%s316 + $0x110] sm:%s309]
                  %353 = vst [vmem:[%s317 + $0x44] sm:%s309] %v352
                  %v354 = vld [vmem:[%s316 + $0x120] sm:%s309]
                  %355 = vst [vmem:[%s317 + $0x48] sm:%s309] %v354
                  %v356 = vld [vmem:[%s316 + $0x130] sm:%s309]
                  %357 = vst [vmem:[%s317 + $0x4c] sm:%s309] %v356
                  %v358 = vld [vmem:[%s316 + $0x140] sm:%s309]
                  %359 = vst [vmem:[%s317 + $0x50] sm:%s309] %v358
                  %v360 = vld [vmem:[%s316 + $0x150] sm:%s309]
                  %361 = vst [vmem:[%s317 + $0x54] sm:%s309] %v360
                  %v362 = vld [vmem:[%s316 + $0x160] sm:%s309]
                  %363 = vst [vmem:[%s317 + $0x58] sm:%s309] %v362
                  %v364 = vld [vmem:[%s316 + $0x170] sm:%s309]
                  %365 = vst [vmem:[%s317 + $0x5c] sm:%s309] %v364
                  %v366 = vld [vmem:[%s316 + $0x180] sm:%s309]
                  %367 = vst [vmem:[%s317 + $0x60] sm:%s309] %v366
                  %v368 = vld [vmem:[%s316 + $0x190] sm:%s309]
                  %369 = vst [vmem:[%s317 + $0x64] sm:%s309] %v368
                  %v370 = vld [vmem:[%s316 + $0x1a0] sm:%s309]
                  %371 = vst [vmem:[%s317 + $0x68] sm:%s309] %v370
                  %v372 = vld [vmem:[%s316 + $0x1b0] sm:%s309]
                  %373 = vst [vmem:[%s317 + $0x6c] sm:%s309] %v372
                  %v374 = vld [vmem:[%s316 + $0x1c0] sm:%s309]
                  %375 = vst [vmem:[%s317 + $0x70] sm:%s309] %v374
                  %v376 = vld [vmem:[%s316 + $0x1d0] sm:%s309]
                  %377 = vst [vmem:[%s317 + $0x74] sm:%s309] %v376
                  %v378 = vld [vmem:[%s316 + $0x1e0] sm:%s309]
                  %379 = vst [vmem:[%s317 + $0x78] sm:%s309] %v378
                  %v380 = vld [vmem:[%s316 + $0x1f0] sm:%s309]
                  %381 = vst [vmem:[%s317 + $0x7c] sm:%s309] %v380
                $region67: #{policy_and_value_forward.3} parent=54 // loop_footer
                  %s315 = sadd.s32 1, %s311
                $region68: #{policy_and_value_forward.3} parent=54 // loop_footer_branch
                  %310 = sbr.rel target = $region64
                $region69: #{policy_and_value_forward.3} parent=54 // loop_exit
                  _
              $region55: #{policy_and_value_forward.3} parent=39 // pred_fallthru
                _
            $region40: #{policy_and_value_forward.3} parent=35 // pred_fallthru
              _
            // Predicated region
            $region41: #{policy_and_value_forward.3} parent=35 // pred_check
              _
            $region42: #{policy_and_value_forward.3} parent=35 // pred_check_branch
              %223 = sbr.rel (0) target = $region44
            $region43: #{policy_and_value_forward.3} parent=35 // pred_region
              %s225 = ssub.s32 16, 1
              loop: start=0, step=1, limit=1
              $region45: #{policy_and_value_forward.3} parent=43 // loop_pre_header
                _
              $region46: #{policy_and_value_forward.3} parent=43 // loop_header
                %s227 = sphi 0, %s231
                %p228 = scmp.ge.s32.totalorder %s227, 1
                %s232 = sphi %s217, %s217
                %s233 = sphi %s215, %s215
              $region47: #{policy_and_value_forward.3} parent=43 // loop_header_branch
                %230 = sbr.rel (%p228) target = $region51
              $region48: #{policy_and_value_forward.3} parent=43 // loop_body
                %v234 = vld [vmem:[%s232] sm:%s225]
                %235 = vst [vmem:[%s233] sm:%s225] %v234
                %v236 = vld [vmem:[%s232 + $0x10] sm:%s225]
                %237 = vst [vmem:[%s233 + $0x4] sm:%s225] %v236
                %v238 = vld [vmem:[%s232 + $0x20] sm:%s225]
                %239 = vst [vmem:[%s233 + $0x8] sm:%s225] %v238
                %v240 = vld [vmem:[%s232 + $0x30] sm:%s225]
                %241 = vst [vmem:[%s233 + $0xc] sm:%s225] %v240
                %v242 = vld [vmem:[%s232 + $0x40] sm:%s225]
                %243 = vst [vmem:[%s233 + $0x10] sm:%s225] %v242
                %v244 = vld [vmem:[%s232 + $0x50] sm:%s225]
                %245 = vst [vmem:[%s233 + $0x14] sm:%s225] %v244
                %v246 = vld [vmem:[%s232 + $0x60] sm:%s225]
                %247 = vst [vmem:[%s233 + $0x18] sm:%s225] %v246
                %v248 = vld [vmem:[%s232 + $0x70] sm:%s225]
                %249 = vst [vmem:[%s233 + $0x1c] sm:%s225] %v248
                %v250 = vld [vmem:[%s232 + $0x80] sm:%s225]
                %251 = vst [vmem:[%s233 + $0x20] sm:%s225] %v250
                %v252 = vld [vmem:[%s232 + $0x90] sm:%s225]
                %253 = vst [vmem:[%s233 + $0x24] sm:%s225] %v252
                %v254 = vld [vmem:[%s232 + $0xa0] sm:%s225]
                %255 = vst [vmem:[%s233 + $0x28] sm:%s225] %v254
                %v256 = vld [vmem:[%s232 + $0xb0] sm:%s225]
                %257 = vst [vmem:[%s233 + $0x2c] sm:%s225] %v256
                %v258 = vld [vmem:[%s232 + $0xc0] sm:%s225]
                %259 = vst [vmem:[%s233 + $0x30] sm:%s225] %v258
                %v260 = vld [vmem:[%s232 + $0xd0] sm:%s225]
                %261 = vst [vmem:[%s233 + $0x34] sm:%s225] %v260
                %v262 = vld [vmem:[%s232 + $0xe0] sm:%s225]
                %263 = vst [vmem:[%s233 + $0x38] sm:%s225] %v262
                %v264 = vld [vmem:[%s232 + $0xf0] sm:%s225]
                %265 = vst [vmem:[%s233 + $0x3c] sm:%s225] %v264
                %v266 = vld [vmem:[%s232 + $0x100] sm:%s225]
                %267 = vst [vmem:[%s233 + $0x40] sm:%s225] %v266
                %v268 = vld [vmem:[%s232 + $0x110] sm:%s225]
                %269 = vst [vmem:[%s233 + $0x44] sm:%s225] %v268
                %v270 = vld [vmem:[%s232 + $0x120] sm:%s225]
                %271 = vst [vmem:[%s233 + $0x48] sm:%s225] %v270
                %v272 = vld [vmem:[%s232 + $0x130] sm:%s225]
                %273 = vst [vmem:[%s233 + $0x4c] sm:%s225] %v272
                %v274 = vld [vmem:[%s232 + $0x140] sm:%s225]
                %275 = vst [vmem:[%s233 + $0x50] sm:%s225] %v274
                %v276 = vld [vmem:[%s232 + $0x150] sm:%s225]
                %277 = vst [vmem:[%s233 + $0x54] sm:%s225] %v276
                %v278 = vld [vmem:[%s232 + $0x160] sm:%s225]
                %279 = vst [vmem:[%s233 + $0x58] sm:%s225] %v278
                %v280 = vld [vmem:[%s232 + $0x170] sm:%s225]
                %281 = vst [vmem:[%s233 + $0x5c] sm:%s225] %v280
                %v282 = vld [vmem:[%s232 + $0x180] sm:%s225]
                %283 = vst [vmem:[%s233 + $0x60] sm:%s225] %v282
                %v284 = vld [vmem:[%s232 + $0x190] sm:%s225]
                %285 = vst [vmem:[%s233 + $0x64] sm:%s225] %v284
                %v286 = vld [vmem:[%s232 + $0x1a0] sm:%s225]
                %287 = vst [vmem:[%s233 + $0x68] sm:%s225] %v286
                %v288 = vld [vmem:[%s232 + $0x1b0] sm:%s225]
                %289 = vst [vmem:[%s233 + $0x6c] sm:%s225] %v288
                %v290 = vld [vmem:[%s232 + $0x1c0] sm:%s225]
                %291 = vst [vmem:[%s233 + $0x70] sm:%s225] %v290
                %v292 = vld [vmem:[%s232 + $0x1d0] sm:%s225]
                %293 = vst [vmem:[%s233 + $0x74] sm:%s225] %v292
                %v294 = vld [vmem:[%s232 + $0x1e0] sm:%s225]
                %295 = vst [vmem:[%s233 + $0x78] sm:%s225] %v294
                %v296 = vld [vmem:[%s232 + $0x1f0] sm:%s225]
                %297 = vst [vmem:[%s233 + $0x7c] sm:%s225] %v296
              $region49: #{policy_and_value_forward.3} parent=43 // loop_footer
                %s231 = sadd.s32 1, %s227
              $region50: #{policy_and_value_forward.3} parent=43 // loop_footer_branch
                %226 = sbr.rel target = $region46
              $region51: #{policy_and_value_forward.3} parent=43 // loop_exit
                _
            $region44: #{policy_and_value_forward.3} parent=35 // pred_fallthru
              _
          $region36: #{policy_and_value_forward.3} parent=31 // pred_fallthru
            _
          %382 = vnop
        $region32: #{policy_and_value_forward.3} parent=27 // pred_fallthru
          _
        // Predicated region
        $region70: #{policy_and_value_forward.3} parent=27 // pred_check
          %p383 = pneg %p140
        $region71: #{policy_and_value_forward.3} parent=27 // pred_check_branch
          %385 = sbr.rel (%p383) target = $region73
        $region72: #{policy_and_value_forward.3} parent=27 // pred_region
          %p386 = scmp.lt.s32.totalorder %s22, 3
          %s387 = scalar_select %p386, %s22, 3
          %s388 = scalar_lea.vmem %s4, %s387
        $region73: #{policy_and_value_forward.3} parent=27 // pred_fallthru
          _
      $region28: #{policy_and_value_forward.3} parent=5 // pred_fallthru
        _
      %p389 = scmp.le.s32.totalorder 1, %s14
      %p390 = scmp.lt.s32.totalorder %s14, 5
      %p391 = pnand %p389, %p390
      %p392 = pneg %p391
      // Predicated region
      $region74: #{policy_and_value_forward.3} parent=5 // pred_check
        _
      $region75: #{policy_and_value_forward.3} parent=5 // pred_check_branch
        %394 = sbr.rel (%p391) target = $region77
      $region76: #{policy_and_value_forward.3} parent=5 // pred_region
        %s395 = ssub.s32 %s14, 1
        %s396 = sand.u32 %s107, 1
        %s397 = sand.u32 %s107, 1
        %s398 = smul.addr %s397, 128
        %s399 = scalar_lea.vmem [#allocation3], %s398
        // Predicated region
        $region78: #{policy_and_value_forward.3} parent=76 // pred_check
          %p400 = pneg %p120
        $region79: #{policy_and_value_forward.3} parent=76 // pred_check_branch
          %402 = sbr.rel (%p400) target = $region81
        $region80: #{policy_and_value_forward.3} parent=76 // pred_region
          _
        $region81: #{policy_and_value_forward.3} parent=76 // pred_fallthru
          _
        %s403 = smul.u32 16, %s23
        %p404 = scmp.lt.s32.totalorder %s403, 15
        %s405 = scalar_select %p404, %s403, 15
        %s406 = smul.addr %s405, 2
        %s407 = smul.addr %s406, 4
        %s408 = scalar_lea.vmem %s0, %s407
        %p409 = pneg %p52
        %p410 = pneg %p49
        %p411 = pneg %p73
        %p412 = pneg %p70
        %p413 = pneg %p94
        %p414 = pneg %p91
        %s415 = sand.u32 %s107, 1
        %s416 = sand.u32 %s107, 1
        %s417 = smul.addr %s416, 128
        %s418 = scalar_lea.vmem [#allocation3], %s417
        %p419 = pneg %p120
        %p420 = pneg %p117
        %p421 = scmp.lt.s32.totalorder %s24, 3
        %s422 = scalar_select %p421, %s24, 3
        %s423 = scalar_lea.vmem %s4, %s422
        %p424 = pneg %p146
        %p425 = pneg %p143
        %p426 = pneg %p174
        %p427 = pneg %p171
        %s428 = sand.u32 %s161, 1
        %s429 = scalar_lea.sflag [#allocation5], %s428
        %s430 = sand.u32 %s161, 1
        %s431 = smul.addr %s430, 64
        %s432 = scalar_lea.vmem [#allocation4], %s431
        %s433 = smul.u32 16, %s23
        %p434 = scmp.lt.s32.totalorder %s433, 15
        %s435 = scalar_select %p434, %s433, 15
        %s436 = smul.addr %s435, 2
        %s437 = smul.addr %s436, 4
        %s438 = scalar_lea.vmem %s0, %s437
        %s439 = smul.u32 16, %s23
        %p440 = scmp.lt.s32.totalorder %s24, 3
        %s441 = scalar_select %p440, %s24, 3
        %s442 = scalar_lea.vmem %s4, %s441
        %s443 = smul.u32 16, %s23
        %p444 = scmp.eq.s32.totalorder %s24, 0
        // Predicated region
        $region82: #{policy_and_value_forward.3} parent=76 // pred_check
          %p445 = pneg %p444
        $region83: #{policy_and_value_forward.3} parent=76 // pred_check_branch
          %447 = sbr.rel (%p445) target = $region85
        $region84: #{policy_and_value_forward.3} parent=76 // pred_region
          %v448 = vld [vmem:[%s438] sm:$0xff]
          %v449 = vld [vmem:[%s438 + $0x8] sm:$0xff]
          %v450 = vld [vmem:[%s438 + $0x10] sm:$0xff]
          %v451 = vld [vmem:[%s438 + $0x18] sm:$0xff]
          %v452 = vld [vmem:[%s438 + $0x20] sm:$0xff]
          %v453 = vld [vmem:[%s438 + $0x28] sm:$0xff]
          %v454 = vld [vmem:[%s438 + $0x30] sm:$0xff]
          %v455 = vld [vmem:[%s438 + $0x38] sm:$0xff]
          %v456 = vld [vmem:[%s438 + $0x40] sm:$0xff]
          %v457 = vld [vmem:[%s438 + $0x48] sm:$0xff]
          %v458 = vld [vmem:[%s438 + $0x50] sm:$0xff]
          %v459 = vld [vmem:[%s438 + $0x58] sm:$0xff]
          %v460 = vld [vmem:[%s438 + $0x60] sm:$0xff]
          %v461 = vld [vmem:[%s438 + $0x68] sm:$0xff]
          %v462 = vld [vmem:[%s438 + $0x70] sm:$0xff]
          %v463 = vld [vmem:[%s438 + $0x78] sm:$0xff]
          %v464 = vld [vmem:[%s1] sm:$0xff]
          %v465 = vld [vmem:[%s1 + $0x8] sm:$0xff]
          %v466 = vld [vmem:[%s1 + $0x10] sm:$0xff]
          %v467 = vld [vmem:[%s1 + $0x18] sm:$0xff]
          %v468 = vld [vmem:[%s1 + $0x20] sm:$0xff]
          %v469 = vld [vmem:[%s1 + $0x28] sm:$0xff]
          %v470 = vld [vmem:[%s1 + $0x30] sm:$0xff]
          %v471 = vld [vmem:[%s1 + $0x38] sm:$0xff]
          %v472 = vld [vmem:[%s1 + $0x40] sm:$0xff]
          %v473 = vld [vmem:[%s1 + $0x48] sm:$0xff]
          %v474 = vld [vmem:[%s1 + $0x50] sm:$0xff]
          %v475 = vld [vmem:[%s1 + $0x58] sm:$0xff]
          %v476 = vld [vmem:[%s1 + $0x60] sm:$0xff]
          %v477 = vld [vmem:[%s1 + $0x68] sm:$0xff]
          %v478 = vld [vmem:[%s1 + $0x70] sm:$0xff]
          %v479 = vld [vmem:[%s1 + $0x78] sm:$0xff]
          %v480 = vld [vmem:[%s1 + $0x80] sm:$0xff]
          %v481 = vld [vmem:[%s1 + $0x88] sm:$0xff]
          %v482 = vld [vmem:[%s1 + $0x90] sm:$0xff]
          %v483 = vld [vmem:[%s1 + $0x98] sm:$0xff]
          %v484 = vld [vmem:[%s1 + $0xa0] sm:$0xff]
          %v485 = vld [vmem:[%s1 + $0xa8] sm:$0xff]
          %v486 = vld [vmem:[%s1 + $0xb0] sm:$0xff]
          %v487 = vld [vmem:[%s1 + $0xb8] sm:$0xff]
          %v488 = vld [vmem:[%s1 + $0xc0] sm:$0xff]
          %v489 = vld [vmem:[%s1 + $0xc8] sm:$0xff]
          %v490 = vld [vmem:[%s1 + $0xd0] sm:$0xff]
          %v491 = vld [vmem:[%s1 + $0xd8] sm:$0xff]
          %v492 = vld [vmem:[%s1 + $0xe0] sm:$0xff]
          %v493 = vld [vmem:[%s1 + $0xe8] sm:$0xff]
          %v494 = vld [vmem:[%s1 + $0xf0] sm:$0xff]
          %v495 = vld [vmem:[%s1 + $0xf8] sm:$0xff]
          %v496 = vld [vmem:[%s2] sm:$0x3]
          %v498 = vperm.slane %v496, 0
          %v499 = vperm.slane %v496, 1
          %v518 = vunpack.c.l.b16 %v448
          %v519 = vunpack.c.h.b16 %v448
          %v520 = vunpack.c.l.b16 %v449
          %v521 = vunpack.c.h.b16 %v449
          %v522 = vunpack.c.l.b16 %v450
          %v523 = vunpack.c.h.b16 %v450
          %v524 = vunpack.c.l.b16 %v451
          %v525 = vunpack.c.h.b16 %v451
          %v526 = vunpack.c.l.b16 %v452
          %v527 = vunpack.c.h.b16 %v452
          %v528 = vunpack.c.l.b16 %v453
          %v529 = vunpack.c.h.b16 %v453
          %v530 = vunpack.c.l.b16 %v454
          %v531 = vunpack.c.h.b16 %v454
          %v532 = vunpack.c.l.b16 %v455
          %v533 = vunpack.c.h.b16 %v455
          %v534 = vunpack.c.l.b16 %v456
          %v535 = vunpack.c.h.b16 %v456
          %v536 = vunpack.c.l.b16 %v457
          %v537 = vunpack.c.h.b16 %v457
          %v538 = vunpack.c.l.b16 %v458
          %v539 = vunpack.c.h.b16 %v458
          %v540 = vunpack.c.l.b16 %v459
          %v541 = vunpack.c.h.b16 %v459
          %v542 = vunpack.c.l.b16 %v460
          %v543 = vunpack.c.h.b16 %v460
          %v544 = vunpack.c.l.b16 %v461
          %v545 = vunpack.c.h.b16 %v461
          %v546 = vunpack.c.l.b16 %v462
          %v547 = vunpack.c.h.b16 %v462
          %v548 = vunpack.c.l.b16 %v463
          %v549 = vunpack.c.h.b16 %v463
          %v550 = vpack.c.b16 %v520, %v518
          %v551 = vpack.c.b16 %v521, %v519
          %v552 = vpack.c.b16 %v524, %v522
          %v553 = vpack.c.b16 %v525, %v523
          %v554 = vpack.c.b16 %v528, %v526
          %v555 = vpack.c.b16 %v529, %v527
          %v556 = vpack.c.b16 %v532, %v530
          %v557 = vpack.c.b16 %v533, %v531
          %v558 = vpack.c.b16 %v536, %v534
          %v559 = vpack.c.b16 %v537, %v535
          %v560 = vpack.c.b16 %v540, %v538
          %v561 = vpack.c.b16 %v541, %v539
          %v562 = vpack.c.b16 %v544, %v542
          %v563 = vpack.c.b16 %v545, %v543
          %v564 = vpack.c.b16 %v548, %v546
          %v565 = vpack.c.b16 %v549, %v547
          %v614 = vunpack.c.l.b16 %v464
          %v615 = vunpack.c.h.b16 %v464
          %v616 = vunpack.c.l.b16 %v465
          %v617 = vunpack.c.h.b16 %v465
          %v618 = vunpack.c.l.b16 %v466
          %v619 = vunpack.c.h.b16 %v466
          %v620 = vunpack.c.l.b16 %v467
          %v621 = vunpack.c.h.b16 %v467
          %v622 = vunpack.c.l.b16 %v468
          %v623 = vunpack.c.h.b16 %v468
          %v624 = vunpack.c.l.b16 %v469
          %v625 = vunpack.c.h.b16 %v469
          %v626 = vunpack.c.l.b16 %v470
          %v627 = vunpack.c.h.b16 %v470
          %v628 = vunpack.c.l.b16 %v471
          %v629 = vunpack.c.h.b16 %v471
          %v630 = vunpack.c.l.b16 %v472
          %v631 = vunpack.c.h.b16 %v472
          %v632 = vunpack.c.l.b16 %v473
          %v633 = vunpack.c.h.b16 %v473
          %v634 = vunpack.c.l.b16 %v474
          %v635 = vunpack.c.h.b16 %v474
          %v636 = vunpack.c.l.b16 %v475
          %v637 = vunpack.c.h.b16 %v475
          %v638 = vunpack.c.l.b16 %v476
          %v639 = vunpack.c.h.b16 %v476
          %v640 = vunpack.c.l.b16 %v477
          %v641 = vunpack.c.h.b16 %v477
          %v642 = vunpack.c.l.b16 %v478
          %v643 = vunpack.c.h.b16 %v478
          %v644 = vunpack.c.l.b16 %v479
          %v645 = vunpack.c.h.b16 %v479
          %v646 = vunpack.c.l.b16 %v480
          %v647 = vunpack.c.h.b16 %v480
          %v648 = vunpack.c.l.b16 %v481
          %v649 = vunpack.c.h.b16 %v481
          %v650 = vunpack.c.l.b16 %v482
          %v651 = vunpack.c.h.b16 %v482
          %v652 = vunpack.c.l.b16 %v483
          %v653 = vunpack.c.h.b16 %v483
          %v654 = vunpack.c.l.b16 %v484
          %v655 = vunpack.c.h.b16 %v484
          %v656 = vunpack.c.l.b16 %v485
          %v657 = vunpack.c.h.b16 %v485
          %v658 = vunpack.c.l.b16 %v486
          %v659 = vunpack.c.h.b16 %v486
          %v660 = vunpack.c.l.b16 %v487
          %v661 = vunpack.c.h.b16 %v487
          %v662 = vunpack.c.l.b16 %v488
          %v663 = vunpack.c.h.b16 %v488
          %v664 = vunpack.c.l.b16 %v489
          %v665 = vunpack.c.h.b16 %v489
          %v666 = vunpack.c.l.b16 %v490
          %v667 = vunpack.c.h.b16 %v490
          %v668 = vunpack.c.l.b16 %v491
          %v669 = vunpack.c.h.b16 %v491
          %v670 = vunpack.c.l.b16 %v492
          %v671 = vunpack.c.h.b16 %v492
          %v672 = vunpack.c.l.b16 %v493
          %v673 = vunpack.c.h.b16 %v493
          %v674 = vunpack.c.l.b16 %v494
          %v675 = vunpack.c.h.b16 %v494
          %v676 = vunpack.c.l.b16 %v495
          %v677 = vunpack.c.h.b16 %v495
          %v678 = vpack.c.b16 %v616, %v614
          %v679 = vpack.c.b16 %v617, %v615
          %v680 = vpack.c.b16 %v620, %v618
          %v681 = vpack.c.b16 %v621, %v619
          %v682 = vpack.c.b16 %v624, %v622
          %v683 = vpack.c.b16 %v625, %v623
          %v684 = vpack.c.b16 %v628, %v626
          %v685 = vpack.c.b16 %v629, %v627
          %v686 = vpack.c.b16 %v632, %v630
          %v687 = vpack.c.b16 %v633, %v631
          %v688 = vpack.c.b16 %v636, %v634
          %v689 = vpack.c.b16 %v637, %v635
          %v690 = vpack.c.b16 %v640, %v638
          %v691 = vpack.c.b16 %v641, %v639
          %v692 = vpack.c.b16 %v644, %v642
          %v693 = vpack.c.b16 %v645, %v643
          %v694 = vpack.c.b16 %v648, %v646
          %v695 = vpack.c.b16 %v649, %v647
          %v696 = vpack.c.b16 %v652, %v650
          %v697 = vpack.c.b16 %v653, %v651
          %v698 = vpack.c.b16 %v656, %v654
          %v699 = vpack.c.b16 %v657, %v655
          %v700 = vpack.c.b16 %v660, %v658
          %v701 = vpack.c.b16 %v661, %v659
          %v702 = vpack.c.b16 %v664, %v662
          %v703 = vpack.c.b16 %v665, %v663
          %v704 = vpack.c.b16 %v668, %v666
          %v705 = vpack.c.b16 %v669, %v667
          %v706 = vpack.c.b16 %v672, %v670
          %v707 = vpack.c.b16 %v673, %v671
          %v708 = vpack.c.b16 %v676, %v674
          %v709 = vpack.c.b16 %v677, %v675
          %742 = vmatpush.bf16.msra.mxu0 %v692
          %743 = vmatpush.bf16.msra.mxu0 %v690
          %744 = vmatpush.bf16.msra.mxu0 %v688
          %745 = vmatpush.bf16.msra.mxu0 %v686
          %746 = vmatpush.bf16.msra.mxu0 %v684
          %747 = vmatpush.bf16.msra.mxu0 %v682
          %748 = vmatpush.bf16.msra.mxu0 %v680
          %749 = vmatpush.bf16.msra.mxu0 %v678
          %750 = vmatmul.bf16.gmra.mxu0 %v550
          %v751 = vpop.f32.mrf.mxu0
          %v752 = vadd.f32 %v498, %v751
          %v753 = vpop.f32.mrf.mxu0
          %v754 = vadd.f32 %v498, %v753
          %755 = vmatmul.bf16.gmra.mxu0 %v552
          %v756 = vpop.f32.mrf.mxu0
          %v757 = vadd.f32 %v498, %v756
          %v758 = vpop.f32.mrf.mxu0
          %v759 = vadd.f32 %v498, %v758
          %760 = vmatmul.bf16.gmra.mxu0 %v554
          %v761 = vpop.f32.mrf.mxu0
          %v762 = vadd.f32 %v498, %v761
          %v763 = vpop.f32.mrf.mxu0
          %v764 = vadd.f32 %v498, %v763
          %765 = vmatmul.bf16.gmra.mxu0 %v556
          %v766 = vpop.f32.mrf.mxu0
          %v767 = vadd.f32 %v498, %v766
          %v768 = vpop.f32.mrf.mxu0
          %v769 = vadd.f32 %v498, %v768
          %770 = vmatmul.bf16.gmra.mxu0 %v558
          %v771 = vpop.f32.mrf.mxu0
          %v772 = vadd.f32 %v498, %v771
          %v773 = vpop.f32.mrf.mxu0
          %v774 = vadd.f32 %v498, %v773
          %775 = vmatmul.bf16.gmra.mxu0 %v560
          %v776 = vpop.f32.mrf.mxu0
          %v777 = vadd.f32 %v498, %v776
          %v778 = vpop.f32.mrf.mxu0
          %v779 = vadd.f32 %v498, %v778
          %780 = vmatmul.bf16.gmra.mxu0 %v562
          %v781 = vpop.f32.mrf.mxu0
          %v782 = vadd.f32 %v498, %v781
          %v783 = vpop.f32.mrf.mxu0
          %v784 = vadd.f32 %v498, %v783
          %785 = vmatmul.bf16.gmra.mxu0 %v564
          %v786 = vpop.f32.mrf.mxu0
          %v787 = vadd.f32 %v498, %v786
          %v788 = vpop.f32.mrf.mxu0
          %v789 = vadd.f32 %v498, %v788
          %790 = vdwg.mxu0
          %791 = vmatpush.bf16.msra.mxu0 %v708
          %792 = vmatpush.bf16.msra.mxu0 %v706
          %793 = vmatpush.bf16.msra.mxu0 %v704
          %794 = vmatpush.bf16.msra.mxu0 %v702
          %795 = vmatpush.bf16.msra.mxu0 %v700
          %796 = vmatpush.bf16.msra.mxu0 %v698
          %797 = vmatpush.bf16.msra.mxu0 %v696
          %798 = vmatpush.bf16.msra.mxu0 %v694
          %799 = vmatmul.bf16.gmra.mxu0 %v551
          %v800 = vpop.f32.mrf.mxu0
          %v801 = vadd.f32 %v752, %v800
          %v802 = vpop.f32.mrf.mxu0
          %v803 = vadd.f32 %v754, %v802
          %804 = vmatmul.bf16.gmra.mxu0 %v553
          %v805 = vpop.f32.mrf.mxu0
          %v806 = vadd.f32 %v757, %v805
          %v807 = vpop.f32.mrf.mxu0
          %v808 = vadd.f32 %v759, %v807
          %809 = vmatmul.bf16.gmra.mxu0 %v555
          %v810 = vpop.f32.mrf.mxu0
          %v811 = vadd.f32 %v762, %v810
          %v812 = vpop.f32.mrf.mxu0
          %v813 = vadd.f32 %v764, %v812
          %814 = vmatmul.bf16.gmra.mxu0 %v557
          %v815 = vpop.f32.mrf.mxu0
          %v816 = vadd.f32 %v767, %v815
          %v817 = vpop.f32.mrf.mxu0
          %v818 = vadd.f32 %v769, %v817
          %819 = vmatmul.bf16.gmra.mxu0 %v559
          %v820 = vpop.f32.mrf.mxu0
          %v821 = vadd.f32 %v772, %v820
          %v822 = vpop.f32.mrf.mxu0
          %v823 = vadd.f32 %v774, %v822
          %824 = vmatmul.bf16.gmra.mxu0 %v561
          %v825 = vpop.f32.mrf.mxu0
          %v826 = vadd.f32 %v777, %v825
          %v827 = vpop.f32.mrf.mxu0
          %v828 = vadd.f32 %v779, %v827
          %829 = vmatmul.bf16.gmra.mxu0 %v563
          %v830 = vpop.f32.mrf.mxu0
          %v831 = vadd.f32 %v782, %v830
          %v832 = vpop.f32.mrf.mxu0
          %v833 = vadd.f32 %v784, %v832
          %834 = vmatmul.bf16.gmra.mxu0 %v565
          %v835 = vpop.f32.mrf.mxu0
          %v836 = vadd.f32 %v787, %v835
          %v837 = vpop.f32.mrf.mxu0
          %v838 = vadd.f32 %v789, %v837
          %839 = vdwg.mxu0
          %840 = vmatpush.bf16.msra.mxu0 %v693
          %841 = vmatpush.bf16.msra.mxu0 %v691
          %842 = vmatpush.bf16.msra.mxu0 %v689
          %843 = vmatpush.bf16.msra.mxu0 %v687
          %844 = vmatpush.bf16.msra.mxu0 %v685
          %845 = vmatpush.bf16.msra.mxu0 %v683
          %846 = vmatpush.bf16.msra.mxu0 %v681
          %847 = vmatpush.bf16.msra.mxu0 %v679
          %848 = vmatmul.bf16.gmra.mxu0 %v550
          %v849 = vpop.f32.mrf.mxu0
          %v850 = vadd.f32 %v499, %v849
          %v851 = vpop.f32.mrf.mxu0
          %v852 = vadd.f32 %v499, %v851
          %853 = vmatmul.bf16.gmra.mxu0 %v552
          %v854 = vpop.f32.mrf.mxu0
          %v855 = vadd.f32 %v499, %v854
          %v856 = vpop.f32.mrf.mxu0
          %v857 = vadd.f32 %v499, %v856
          %858 = vmatmul.bf16.gmra.mxu0 %v554
          %v859 = vpop.f32.mrf.mxu0
          %v860 = vadd.f32 %v499, %v859
          %v861 = vpop.f32.mrf.mxu0
          %v862 = vadd.f32 %v499, %v861
          %863 = vmatmul.bf16.gmra.mxu0 %v556
          %v864 = vpop.f32.mrf.mxu0
          %v865 = vadd.f32 %v499, %v864
          %v866 = vpop.f32.mrf.mxu0
          %v867 = vadd.f32 %v499, %v866
          %868 = vmatmul.bf16.gmra.mxu0 %v558
          %v869 = vpop.f32.mrf.mxu0
          %v870 = vadd.f32 %v499, %v869
          %v871 = vpop.f32.mrf.mxu0
          %v872 = vadd.f32 %v499, %v871
          %873 = vmatmul.bf16.gmra.mxu0 %v560
          %v874 = vpop.f32.mrf.mxu0
          %v875 = vadd.f32 %v499, %v874
          %v876 = vpop.f32.mrf.mxu0
          %v877 = vadd.f32 %v499, %v876
          %878 = vmatmul.bf16.gmra.mxu0 %v562
          %v879 = vpop.f32.mrf.mxu0
          %v880 = vadd.f32 %v499, %v879
          %v881 = vpop.f32.mrf.mxu0
          %v882 = vadd.f32 %v499, %v881
          %883 = vmatmul.bf16.gmra.mxu0 %v564
          %v884 = vpop.f32.mrf.mxu0
          %v885 = vadd.f32 %v499, %v884
          %v886 = vpop.f32.mrf.mxu0
          %v887 = vadd.f32 %v499, %v886
          %888 = vdwg.mxu0
          %889 = vmatpush.bf16.msra.mxu0 %v709
          %890 = vmatpush.bf16.msra.mxu0 %v707
          %891 = vmatpush.bf16.msra.mxu0 %v705
          %892 = vmatpush.bf16.msra.mxu0 %v703
          %893 = vmatpush.bf16.msra.mxu0 %v701
          %894 = vmatpush.bf16.msra.mxu0 %v699
          %895 = vmatpush.bf16.msra.mxu0 %v697
          %896 = vmatpush.bf16.msra.mxu0 %v695
          %897 = vmatmul.bf16.gmra.mxu0 %v551
          %v898 = vpop.f32.mrf.mxu0
          %v899 = vadd.f32 %v850, %v898
          %v900 = vpop.f32.mrf.mxu0
          %v901 = vadd.f32 %v852, %v900
          %902 = vmatmul.bf16.gmra.mxu0 %v553
          %v903 = vpop.f32.mrf.mxu0
          %v904 = vadd.f32 %v855, %v903
          %v905 = vpop.f32.mrf.mxu0
          %v906 = vadd.f32 %v857, %v905
          %907 = vmatmul.bf16.gmra.mxu0 %v555
          %v908 = vpop.f32.mrf.mxu0
          %v909 = vadd.f32 %v860, %v908
          %v910 = vpop.f32.mrf.mxu0
          %v911 = vadd.f32 %v862, %v910
          %912 = vmatmul.bf16.gmra.mxu0 %v557
          %v913 = vpop.f32.mrf.mxu0
          %v914 = vadd.f32 %v865, %v913
          %v915 = vpop.f32.mrf.mxu0
          %v916 = vadd.f32 %v867, %v915
          %917 = vmatmul.bf16.gmra.mxu0 %v559
          %v918 = vpop.f32.mrf.mxu0
          %v919 = vadd.f32 %v870, %v918
          %v920 = vpop.f32.mrf.mxu0
          %v921 = vadd.f32 %v872, %v920
          %922 = vmatmul.bf16.gmra.mxu0 %v561
          %v923 = vpop.f32.mrf.mxu0
          %v924 = vadd.f32 %v875, %v923
          %v925 = vpop.f32.mrf.mxu0
          %v926 = vadd.f32 %v877, %v925
          %927 = vmatmul.bf16.gmra.mxu0 %v563
          %v928 = vpop.f32.mrf.mxu0
          %v929 = vadd.f32 %v880, %v928
          %v930 = vpop.f32.mrf.mxu0
          %v931 = vadd.f32 %v882, %v930
          %932 = vmatmul.bf16.gmra.mxu0 %v565
          %v933 = vpop.f32.mrf.mxu0
          %v934 = vadd.f32 %v885, %v933
          %v935 = vpop.f32.mrf.mxu0
          %v936 = vadd.f32 %v887, %v935
          %937 = vdwg.mxu0
          %v938 = vtanh.pop %v801
          %v939 = vtanh.pop %v899
          %v940 = vtanh.pop %v803
          %v941 = vtanh.pop %v901
          %v942 = vtanh.pop %v806
          %v943 = vtanh.pop %v904
          %v944 = vtanh.pop %v808
          %v945 = vtanh.pop %v906
          %v946 = vtanh.pop %v811
          %v947 = vtanh.pop %v909
          %v948 = vtanh.pop %v813
          %v949 = vtanh.pop %v911
          %v950 = vtanh.pop %v816
          %v951 = vtanh.pop %v914
          %v952 = vtanh.pop %v818
          %v953 = vtanh.pop %v916
          %v954 = vtanh.pop %v821
          %v955 = vtanh.pop %v919
          %v956 = vtanh.pop %v823
          %v957 = vtanh.pop %v921
          %v958 = vtanh.pop %v826
          %v959 = vtanh.pop %v924
          %v960 = vtanh.pop %v828
          %v961 = vtanh.pop %v926
          %v962 = vtanh.pop %v831
          %v963 = vtanh.pop %v929
          %v964 = vtanh.pop %v833
          %v965 = vtanh.pop %v931
          %v966 = vtanh.pop %v836
          %v967 = vtanh.pop %v934
          %v968 = vtanh.pop %v838
          %v969 = vtanh.pop %v936
          %v970 = vpack.c.bf16 %v939, %v938
          %v971 = vpack.c.bf16 %v941, %v940
          %v972 = vpack.c.bf16 %v943, %v942
          %v973 = vpack.c.bf16 %v945, %v944
          %v974 = vpack.c.bf16 %v947, %v946
          %v975 = vpack.c.bf16 %v949, %v948
          %v976 = vpack.c.bf16 %v951, %v950
          %v977 = vpack.c.bf16 %v953, %v952
          %v978 = vpack.c.bf16 %v955, %v954
          %v979 = vpack.c.bf16 %v957, %v956
          %v980 = vpack.c.bf16 %v959, %v958
          %v981 = vpack.c.bf16 %v961, %v960
          %v982 = vpack.c.bf16 %v963, %v962
          %v983 = vpack.c.bf16 %v965, %v964
          %v984 = vpack.c.bf16 %v967, %v966
          %v985 = vpack.c.bf16 %v969, %v968
          %986 = vst [vmem:[#allocation2] sm:$0xff] %v970
          %987 = vst [vmem:[#allocation2 + $0x8] sm:$0xff] %v971
          %988 = vst [vmem:[#allocation2 + $0x10] sm:$0xff] %v972
          %989 = vst [vmem:[#allocation2 + $0x18] sm:$0xff] %v973
          %990 = vst [vmem:[#allocation2 + $0x20] sm:$0xff] %v974
          %991 = vst [vmem:[#allocation2 + $0x28] sm:$0xff] %v975
          %992 = vst [vmem:[#allocation2 + $0x30] sm:$0xff] %v976
          %993 = vst [vmem:[#allocation2 + $0x38] sm:$0xff] %v977
          %994 = vst [vmem:[#allocation2 + $0x40] sm:$0xff] %v978
          %995 = vst [vmem:[#allocation2 + $0x48] sm:$0xff] %v979
          %996 = vst [vmem:[#allocation2 + $0x50] sm:$0xff] %v980
          %997 = vst [vmem:[#allocation2 + $0x58] sm:$0xff] %v981
          %998 = vst [vmem:[#allocation2 + $0x60] sm:$0xff] %v982
          %999 = vst [vmem:[#allocation2 + $0x68] sm:$0xff] %v983
          %1000 = vst [vmem:[#allocation2 + $0x70] sm:$0xff] %v984
          %1001 = vst [vmem:[#allocation2 + $0x78] sm:$0xff] %v985
        $region85: #{policy_and_value_forward.3} parent=76 // pred_fallthru
          _
        %v1002 = vld [vmem:[#allocation2] sm:$0xff]
        %v1003 = vld [vmem:[#allocation2 + $0x8] sm:$0xff]
        %v1004 = vld [vmem:[#allocation2 + $0x10] sm:$0xff]
        %v1005 = vld [vmem:[#allocation2 + $0x18] sm:$0xff]
        %v1006 = vld [vmem:[#allocation2 + $0x20] sm:$0xff]
        %v1007 = vld [vmem:[#allocation2 + $0x28] sm:$0xff]
        %v1008 = vld [vmem:[#allocation2 + $0x30] sm:$0xff]
        %v1009 = vld [vmem:[#allocation2 + $0x38] sm:$0xff]
        %v1010 = vld [vmem:[#allocation2 + $0x40] sm:$0xff]
        %v1011 = vld [vmem:[#allocation2 + $0x48] sm:$0xff]
        %v1012 = vld [vmem:[#allocation2 + $0x50] sm:$0xff]
        %v1013 = vld [vmem:[#allocation2 + $0x58] sm:$0xff]
        %v1014 = vld [vmem:[#allocation2 + $0x60] sm:$0xff]
        %v1015 = vld [vmem:[#allocation2 + $0x68] sm:$0xff]
        %v1016 = vld [vmem:[#allocation2 + $0x70] sm:$0xff]
        %v1017 = vld [vmem:[#allocation2 + $0x78] sm:$0xff]
        %v1018 = vld [vmem:[%s399] sm:$0xf]
        %v1019 = vld [vmem:[%s399 + $0x4] sm:$0xf]
        %v1020 = vld [vmem:[%s399 + $0x8] sm:$0xf]
        %v1021 = vld [vmem:[%s399 + $0xc] sm:$0xf]
        %v1022 = vld [vmem:[%s399 + $0x10] sm:$0xf]
        %v1023 = vld [vmem:[%s399 + $0x14] sm:$0xf]
        %v1024 = vld [vmem:[%s399 + $0x18] sm:$0xf]
        %v1025 = vld [vmem:[%s399 + $0x1c] sm:$0xf]
        %v1026 = vld [vmem:[%s399 + $0x20] sm:$0xf]
        %v1027 = vld [vmem:[%s399 + $0x24] sm:$0xf]
        %v1028 = vld [vmem:[%s399 + $0x28] sm:$0xf]
        %v1029 = vld [vmem:[%s399 + $0x2c] sm:$0xf]
        %v1030 = vld [vmem:[%s399 + $0x30] sm:$0xf]
        %v1031 = vld [vmem:[%s399 + $0x34] sm:$0xf]
        %v1032 = vld [vmem:[%s399 + $0x38] sm:$0xf]
        %v1033 = vld [vmem:[%s399 + $0x3c] sm:$0xf]
        %v1034 = vld [vmem:[%s399 + $0x40] sm:$0xf]
        %v1035 = vld [vmem:[%s399 + $0x44] sm:$0xf]
        %v1036 = vld [vmem:[%s399 + $0x48] sm:$0xf]
        %v1037 = vld [vmem:[%s399 + $0x4c] sm:$0xf]
        %v1038 = vld [vmem:[%s399 + $0x50] sm:$0xf]
        %v1039 = vld [vmem:[%s399 + $0x54] sm:$0xf]
        %v1040 = vld [vmem:[%s399 + $0x58] sm:$0xf]
        %v1041 = vld [vmem:[%s399 + $0x5c] sm:$0xf]
        %v1042 = vld [vmem:[%s399 + $0x60] sm:$0xf]
        %v1043 = vld [vmem:[%s399 + $0x64] sm:$0xf]
        %v1044 = vld [vmem:[%s399 + $0x68] sm:$0xf]
        %v1045 = vld [vmem:[%s399 + $0x6c] sm:$0xf]
        %v1046 = vld [vmem:[%s399 + $0x70] sm:$0xf]
        %v1047 = vld [vmem:[%s399 + $0x74] sm:$0xf]
        %v1048 = vld [vmem:[%s399 + $0x78] sm:$0xf]
        %v1049 = vld [vmem:[%s399 + $0x7c] sm:$0xf]
        %v1050 = vld [vmem:[%s442] sm:$0x1]
        %v1052 = vperm.slane %v1050, 0
        %v1070 = vunpack.c.l.b16 %v1002
        %v1071 = vunpack.c.h.b16 %v1002
        %v1072 = vunpack.c.l.b16 %v1003
        %v1073 = vunpack.c.h.b16 %v1003
        %v1074 = vunpack.c.l.b16 %v1004
        %v1075 = vunpack.c.h.b16 %v1004
        %v1076 = vunpack.c.l.b16 %v1005
        %v1077 = vunpack.c.h.b16 %v1005
        %v1078 = vunpack.c.l.b16 %v1006
        %v1079 = vunpack.c.h.b16 %v1006
        %v1080 = vunpack.c.l.b16 %v1007
        %v1081 = vunpack.c.h.b16 %v1007
        %v1082 = vunpack.c.l.b16 %v1008
        %v1083 = vunpack.c.h.b16 %v1008
        %v1084 = vunpack.c.l.b16 %v1009
        %v1085 = vunpack.c.h.b16 %v1009
        %v1086 = vunpack.c.l.b16 %v1010
        %v1087 = vunpack.c.h.b16 %v1010
        %v1088 = vunpack.c.l.b16 %v1011
        %v1089 = vunpack.c.h.b16 %v1011
        %v1090 = vunpack.c.l.b16 %v1012
        %v1091 = vunpack.c.h.b16 %v1012
        %v1092 = vunpack.c.l.b16 %v1013
        %v1093 = vunpack.c.h.b16 %v1013
        %v1094 = vunpack.c.l.b16 %v1014
        %v1095 = vunpack.c.h.b16 %v1014
        %v1096 = vunpack.c.l.b16 %v1015
        %v1097 = vunpack.c.h.b16 %v1015
        %v1098 = vunpack.c.l.b16 %v1016
        %v1099 = vunpack.c.h.b16 %v1016
        %v1100 = vunpack.c.l.b16 %v1017
        %v1101 = vunpack.c.h.b16 %v1017
        %v1102 = vpack.c.b16 %v1072, %v1070
        %v1103 = vpack.c.b16 %v1073, %v1071
        %v1104 = vpack.c.b16 %v1076, %v1074
        %v1105 = vpack.c.b16 %v1077, %v1075
        %v1106 = vpack.c.b16 %v1080, %v1078
        %v1107 = vpack.c.b16 %v1081, %v1079
        %v1108 = vpack.c.b16 %v1084, %v1082
        %v1109 = vpack.c.b16 %v1085, %v1083
        %v1110 = vpack.c.b16 %v1088, %v1086
        %v1111 = vpack.c.b16 %v1089, %v1087
        %v1112 = vpack.c.b16 %v1092, %v1090
        %v1113 = vpack.c.b16 %v1093, %v1091
        %v1114 = vpack.c.b16 %v1096, %v1094
        %v1115 = vpack.c.b16 %v1097, %v1095
        %v1116 = vpack.c.b16 %v1100, %v1098
        %v1117 = vpack.c.b16 %v1101, %v1099
        %v1166 = vunpack.c.l.b16 %v1018
        %v1167 = vunpack.c.l.b16 %v1019
        %v1168 = vunpack.c.l.b16 %v1020
        %v1169 = vunpack.c.l.b16 %v1021
        %v1170 = vunpack.c.l.b16 %v1022
        %v1171 = vunpack.c.l.b16 %v1023
        %v1172 = vunpack.c.l.b16 %v1024
        %v1173 = vunpack.c.l.b16 %v1025
        %v1174 = vunpack.c.l.b16 %v1026
        %v1175 = vunpack.c.l.b16 %v1027
        %v1176 = vunpack.c.l.b16 %v1028
        %v1177 = vunpack.c.l.b16 %v1029
        %v1178 = vunpack.c.l.b16 %v1030
        %v1179 = vunpack.c.l.b16 %v1031
        %v1180 = vunpack.c.l.b16 %v1032
        %v1181 = vunpack.c.l.b16 %v1033
        %v1182 = vunpack.c.l.b16 %v1034
        %v1183 = vunpack.c.l.b16 %v1035
        %v1184 = vunpack.c.l.b16 %v1036
        %v1185 = vunpack.c.l.b16 %v1037
        %v1186 = vunpack.c.l.b16 %v1038
        %v1187 = vunpack.c.l.b16 %v1039
        %v1188 = vunpack.c.l.b16 %v1040
        %v1189 = vunpack.c.l.b16 %v1041
        %v1190 = vunpack.c.l.b16 %v1042
        %v1191 = vunpack.c.l.b16 %v1043
        %v1192 = vunpack.c.l.b16 %v1044
        %v1193 = vunpack.c.l.b16 %v1045
        %v1194 = vunpack.c.l.b16 %v1046
        %v1195 = vunpack.c.l.b16 %v1047
        %v1196 = vunpack.c.l.b16 %v1048
        %v1197 = vunpack.c.l.b16 %v1049
        %v1198 = vpack.c.b16 %v1167, %v1166
        %v1199 = vpack.c.b16 %v1169, %v1168
        %v1200 = vpack.c.b16 %v1171, %v1170
        %v1201 = vpack.c.b16 %v1173, %v1172
        %v1202 = vpack.c.b16 %v1175, %v1174
        %v1203 = vpack.c.b16 %v1177, %v1176
        %v1204 = vpack.c.b16 %v1179, %v1178
        %v1205 = vpack.c.b16 %v1181, %v1180
        %v1206 = vpack.c.b16 %v1183, %v1182
        %v1207 = vpack.c.b16 %v1185, %v1184
        %v1208 = vpack.c.b16 %v1187, %v1186
        %v1209 = vpack.c.b16 %v1189, %v1188
        %v1210 = vpack.c.b16 %v1191, %v1190
        %v1211 = vpack.c.b16 %v1193, %v1192
        %v1212 = vpack.c.b16 %v1195, %v1194
        %v1213 = vpack.c.b16 %v1197, %v1196
        %1230 = vmatpush.bf16.msra.mxu0 %v1205
        %1231 = vmatpush.bf16.msra.mxu0 %v1204
        %1232 = vmatpush.bf16.msra.mxu0 %v1203
        %1233 = vmatpush.bf16.msra.mxu0 %v1202
        %1234 = vmatpush.bf16.msra.mxu0 %v1201
        %1235 = vmatpush.bf16.msra.mxu0 %v1200
        %1236 = vmatpush.bf16.msra.mxu0 %v1199
        %1237 = vmatpush.bf16.msra.mxu0 %v1198
        %1238 = vmatmul.bf16.gmra.mxu0 %v1102
        %v1239 = vpop.f32.mrf.mxu0
        %v1240 = vadd.f32 %v1052, %v1239
        %v1241 = vpop.f32.mrf.mxu0
        %v1242 = vadd.f32 %v1052, %v1241
        %1243 = vmatmul.bf16.gmra.mxu0 %v1104
        %v1244 = vpop.f32.mrf.mxu0
        %v1245 = vadd.f32 %v1052, %v1244
        %v1246 = vpop.f32.mrf.mxu0
        %v1247 = vadd.f32 %v1052, %v1246
        %1248 = vmatmul.bf16.gmra.mxu0 %v1106
        %v1249 = vpop.f32.mrf.mxu0
        %v1250 = vadd.f32 %v1052, %v1249
        %v1251 = vpop.f32.mrf.mxu0
        %v1252 = vadd.f32 %v1052, %v1251
        %1253 = vmatmul.bf16.gmra.mxu0 %v1108
        %v1254 = vpop.f32.mrf.mxu0
        %v1255 = vadd.f32 %v1052, %v1254
        %v1256 = vpop.f32.mrf.mxu0
        %v1257 = vadd.f32 %v1052, %v1256
        %1258 = vmatmul.bf16.gmra.mxu0 %v1110
        %v1259 = vpop.f32.mrf.mxu0
        %v1260 = vadd.f32 %v1052, %v1259
        %v1261 = vpop.f32.mrf.mxu0
        %v1262 = vadd.f32 %v1052, %v1261
        %1263 = vmatmul.bf16.gmra.mxu0 %v1112
        %v1264 = vpop.f32.mrf.mxu0
        %v1265 = vadd.f32 %v1052, %v1264
        %v1266 = vpop.f32.mrf.mxu0
        %v1267 = vadd.f32 %v1052, %v1266
        %1268 = vmatmul.bf16.gmra.mxu0 %v1114
        %v1269 = vpop.f32.mrf.mxu0
        %v1270 = vadd.f32 %v1052, %v1269
        %v1271 = vpop.f32.mrf.mxu0
        %v1272 = vadd.f32 %v1052, %v1271
        %1273 = vmatmul.bf16.gmra.mxu0 %v1116
        %v1274 = vpop.f32.mrf.mxu0
        %v1275 = vadd.f32 %v1052, %v1274
        %v1276 = vpop.f32.mrf.mxu0
        %v1277 = vadd.f32 %v1052, %v1276
        %1278 = vdwg.mxu0
        %1279 = vmatpush.bf16.msra.mxu0 %v1213
        %1280 = vmatpush.bf16.msra.mxu0 %v1212
        %1281 = vmatpush.bf16.msra.mxu0 %v1211
        %1282 = vmatpush.bf16.msra.mxu0 %v1210
        %1283 = vmatpush.bf16.msra.mxu0 %v1209
        %1284 = vmatpush.bf16.msra.mxu0 %v1208
        %1285 = vmatpush.bf16.msra.mxu0 %v1207
        %1286 = vmatpush.bf16.msra.mxu0 %v1206
        %1287 = vmatmul.bf16.gmra.mxu0 %v1103
        %v1288 = vpop.f32.mrf.mxu0
        %v1289 = vadd.f32 %v1240, %v1288
        %v1290 = vpop.f32.mrf.mxu0
        %v1291 = vadd.f32 %v1242, %v1290
        %1292 = vmatmul.bf16.gmra.mxu0 %v1105
        %v1293 = vpop.f32.mrf.mxu0
        %v1294 = vadd.f32 %v1245, %v1293
        %v1295 = vpop.f32.mrf.mxu0
        %v1296 = vadd.f32 %v1247, %v1295
        %1297 = vmatmul.bf16.gmra.mxu0 %v1107
        %v1298 = vpop.f32.mrf.mxu0
        %v1299 = vadd.f32 %v1250, %v1298
        %v1300 = vpop.f32.mrf.mxu0
        %v1301 = vadd.f32 %v1252, %v1300
        %1302 = vmatmul.bf16.gmra.mxu0 %v1109
        %v1303 = vpop.f32.mrf.mxu0
        %v1304 = vadd.f32 %v1255, %v1303
        %v1305 = vpop.f32.mrf.mxu0
        %v1306 = vadd.f32 %v1257, %v1305
        %1307 = vmatmul.bf16.gmra.mxu0 %v1111
        %v1308 = vpop.f32.mrf.mxu0
        %v1309 = vadd.f32 %v1260, %v1308
        %v1310 = vpop.f32.mrf.mxu0
        %v1311 = vadd.f32 %v1262, %v1310
        %1312 = vmatmul.bf16.gmra.mxu0 %v1113
        %v1313 = vpop.f32.mrf.mxu0
        %v1314 = vadd.f32 %v1265, %v1313
        %v1315 = vpop.f32.mrf.mxu0
        %v1316 = vadd.f32 %v1267, %v1315
        %1317 = vmatmul.bf16.gmra.mxu0 %v1115
        %v1318 = vpop.f32.mrf.mxu0
        %v1319 = vadd.f32 %v1270, %v1318
        %v1320 = vpop.f32.mrf.mxu0
        %v1321 = vadd.f32 %v1272, %v1320
        %1322 = vmatmul.bf16.gmra.mxu0 %v1117
        %v1323 = vpop.f32.mrf.mxu0
        %v1324 = vadd.f32 %v1275, %v1323
        %v1325 = vpop.f32.mrf.mxu0
        %v1326 = vadd.f32 %v1277, %v1325
        %1327 = vdwg.mxu0
        %v1328 = vpack.c.bf16 %v1289, %v1289
        %v1329 = vpack.c.bf16 %v1291, %v1291
        %v1330 = vpack.c.bf16 %v1294, %v1294
        %v1331 = vpack.c.bf16 %v1296, %v1296
        %v1332 = vpack.c.bf16 %v1299, %v1299
        %v1333 = vpack.c.bf16 %v1301, %v1301
        %v1334 = vpack.c.bf16 %v1304, %v1304
        %v1335 = vpack.c.bf16 %v1306, %v1306
        %v1336 = vpack.c.bf16 %v1309, %v1309
        %v1337 = vpack.c.bf16 %v1311, %v1311
        %v1338 = vpack.c.bf16 %v1314, %v1314
        %v1339 = vpack.c.bf16 %v1316, %v1316
        %v1340 = vpack.c.bf16 %v1319, %v1319
        %v1341 = vpack.c.bf16 %v1321, %v1321
        %v1342 = vpack.c.bf16 %v1324, %v1324
        %v1343 = vpack.c.bf16 %v1326, %v1326
        %1344 = vst [vmem:[%s432] sm:$0xf] %v1328
        %1345 = vst [vmem:[%s432 + $0x4] sm:$0xf] %v1329
        %1346 = vst [vmem:[%s432 + $0x8] sm:$0xf] %v1330
        %1347 = vst [vmem:[%s432 + $0xc] sm:$0xf] %v1331
        %1348 = vst [vmem:[%s432 + $0x10] sm:$0xf] %v1332
        %1349 = vst [vmem:[%s432 + $0x14] sm:$0xf] %v1333
        %1350 = vst [vmem:[%s432 + $0x18] sm:$0xf] %v1334
        %1351 = vst [vmem:[%s432 + $0x1c] sm:$0xf] %v1335
        %1352 = vst [vmem:[%s432 + $0x20] sm:$0xf] %v1336
        %1353 = vst [vmem:[%s432 + $0x24] sm:$0xf] %v1337
        %1354 = vst [vmem:[%s432 + $0x28] sm:$0xf] %v1338
        %1355 = vst [vmem:[%s432 + $0x2c] sm:$0xf] %v1339
        %1356 = vst [vmem:[%s432 + $0x30] sm:$0xf] %v1340
        %1357 = vst [vmem:[%s432 + $0x34] sm:$0xf] %v1341
        %1358 = vst [vmem:[%s432 + $0x38] sm:$0xf] %v1342
        %1359 = vst [vmem:[%s432 + $0x3c] sm:$0xf] %v1343
        %s1360 = sand.u32 %s161, 1
        %s1361 = scalar_lea.sflag [#allocation5], %s1360
        %s1362 = sand.u32 %s161, 1
        %s1363 = smul.addr %s1362, 64
        %s1364 = scalar_lea.vmem [#allocation4], %s1363
        // Predicated region
        $region86: #{policy_and_value_forward.3} parent=76 // pred_check
          %p1365 = pneg %p171
        $region87: #{policy_and_value_forward.3} parent=76 // pred_check_branch
          %1367 = sbr.rel (%p1365) target = $region89
        $region88: #{policy_and_value_forward.3} parent=76 // pred_region
          %s1368 = smul.u32 16, %s23
          %1370 = vsyncadd %s1361, 0
          %s1371 = smul.addr %s1368, 4
          %s1372 = sadd.s32 %s24, %s1371
          %s1373 = smul.addr %s1372, 4
          %s1374 = scalar_lea.hbm %s5, %s1373
          %s1375 = sshll.u32 %s1364, 4
          %s1376 = int_to_ptr.vmem [resolvable:$true] %s1375
          %s1377 = sshll.u32 %s1374, 4
          %s1378 = int_to_ptr.hbm [resolvable:$true] %s1377
          %1383 = dma.vmem_to_hbm [thread:$0]  %s1376, 1024, %s1378, %s1361, 64, 256, 4
        $region89: #{policy_and_value_forward.3} parent=76 // pred_fallthru
          _
      $region77: #{policy_and_value_forward.3} parent=5 // pred_fallthru
        _
      %p1384 = scmp.le.s32.totalorder 2, %s14
      // Predicated region
      $region90: #{policy_and_value_forward.3} parent=5 // pred_check
        %p1385 = pneg %p1384
      $region91: #{policy_and_value_forward.3} parent=5 // pred_check_branch
        %1387 = sbr.rel (%p1385) target = $region93
      $region92: #{policy_and_value_forward.3} parent=5 // pred_region
        %s1388 = ssub.s32 %s14, 2
        // Predicated region
        $region94: #{policy_and_value_forward.3} parent=92 // pred_check
          %p1389 = pneg %p177
        $region95: #{policy_and_value_forward.3} parent=92 // pred_check_branch
          %1391 = sbr.rel (%p1389) target = $region97
        $region96: #{policy_and_value_forward.3} parent=92 // pred_region
          %s1392 = sand.u32 %s162, 1
          %s1393 = scalar_lea.sflag [#allocation5], %s1392
          %s1394 = sand.u32 %s162, 1
          %s1395 = smul.addr %s1394, 64
          %s1396 = scalar_lea.vmem [#allocation4], %s1395
          %1398 = dma.done %s1393, 1024
        $region97: #{policy_and_value_forward.3} parent=92 // pred_fallthru
          _
      $region93: #{policy_and_value_forward.3} parent=5 // pred_fallthru
        _
    $region6: #{policy_and_value_forward.3} parent=1 // loop_footer
      %s18 = sadd.s32 1, %s14
    $region7: #{policy_and_value_forward.3} parent=1 // loop_footer_branch
      %13 = sbr.rel target = $region3
    $region8: #{policy_and_value_forward.3} parent=1 // loop_exit
      _
    %1399 = vsyncpa [#allocation5], 1
    %s1400 = scalar_lea.sflag [#allocation5], 1
    %1401 = vsyncpa %s1400, 1

</llo_original>
